<compile_context>
chip_gen: v5e
topology: v5e:2x2
jax: 0.10.0
libtpu: 0.0.40
codegen_flags: <defaults>
</compile_context>

<pallas_src>
import functools

import jax
import jax.numpy as jnp
from jax.experimental import pallas as pl
from jax.experimental.pallas import tpu as pltpu


# ---------------------------------------------------------------------------
# Kernels (one grid step per batch tile; T and C are full-extent).  The
# segment reduction is an unrolled accumulation over (bt, C) slabs so results
# land directly in the output layout (no cross-sublane XLU reduce).
# ---------------------------------------------------------------------------

def _masked_avg_kernel(x_ref, m_ref, o_ref):
    # x_ref: (bt, T, C); m_ref: (bt, T, 1) {0,1} in x dtype; o_ref: (bt, C)
    T = x_ref.shape[1]
    m0 = m_ref[:, 0, :].astype(jnp.float32)                    # (bt, 1)
    acc = x_ref[:, 0, :].astype(jnp.float32) * m0               # (bt, C)
    cnt = m0
    for t in range(1, T):
        mt = m_ref[:, t, :].astype(jnp.float32)
        acc = acc + x_ref[:, t, :].astype(jnp.float32) * mt
        cnt = cnt + mt
    # Exact for valid rows (cnt >= 1); clamp keeps padded / empty rows finite.
    inv = 1.0 / jnp.maximum(cnt, 1.0)
    o_ref[...] = (acc * inv).astype(o_ref.dtype)


def _avg_kernel(x_ref, o_ref, *, inv_t):
    T = x_ref.shape[1]
    acc = x_ref[:, 0, :].astype(jnp.float32)
    for t in range(1, T):
        acc = acc + x_ref[:, t, :].astype(jnp.float32)
    o_ref[...] = (acc * inv_t).astype(o_ref.dtype)


def _max_kernel(x_ref, o_ref):
    T = x_ref.shape[1]
    acc = x_ref[:, 0, :]
    for t in range(1, T):
        acc = jnp.maximum(acc, x_ref[:, t, :])
    o_ref[...] = acc.astype(o_ref.dtype)


# ---------------------------------------------------------------------------
# Chip / tiling heuristics
# ---------------------------------------------------------------------------

def _chip_info():
    """Best-effort (vmem_capacity_bytes, tensorcores_per_chip)."""
    vmem_cap = 64 << 20   # conservative default (v7x per-TC VMEM)
    n_tc = 1
    kind = ""
    try:
        kind = (jax.devices()[0].device_kind or "").lower()
    except Exception:
        kind = ""
    if "v7" in kind:
        vmem_cap, n_tc = 64 << 20, 2
    elif any(g in kind for g in ("v6", "v5", "v4")):
        vmem_cap, n_tc = 128 << 20, 1
    try:
        cap = int(pltpu.get_tpu_info().vmem_capacity_bytes)
        if cap >= (16 << 20):
            vmem_cap = cap
    except Exception:
        pass
    return vmem_cap, n_tc


def _choose_batch_tile(B, T, C, itemsize, target_bytes, num_cores):
    """Pick Bt: multiple of 8 (never 1), <= ~target_bytes per input tile,
    and >=2 grid steps on 2-TC chips when B is large enough."""
    per_row = max(1, T * C * itemsize)
    budget_bt = max(8, (target_bytes // per_row) // 8 * 8)     # 8-aligned, >= 8

    bt = B
    if num_cores >= 2 and B >= 16:
        # Split ~evenly across the 2 TensorCores (sublane-aligned half).
        half = -(-B // 2)
        bt = min(bt, ((half + 7) // 8) * 8)
    bt = min(bt, budget_bt)
    return max(1, min(bt, B))


# ---------------------------------------------------------------------------
# Wrapper
# ---------------------------------------------------------------------------

def segment_consensus(input_tensor, cleanframe=None, consensus_type="avg", dim=1,
                      batch_tile=None):
    """Pallas implementation of SegmentConsensus.forward.

    input_tensor: (B, T, C) array
    cleanframe:   optional (B, T) boolean/int mask; each row must have >=1 True
    """
    assert dim == 1, "only dim=1 (segment axis) is supported"

    if cleanframe is not None and consensus_type != "avg":
        raise NotImplementedError

    if consensus_type == "identity":
        return input_tensor
    if consensus_type not in ("avg", "max"):
        # PyTorch module returns None for unknown consensus types.
        return None

    B, T, C = input_tensor.shape
    dtype = input_tensor.dtype
    itemsize = jnp.dtype(dtype).itemsize

    vmem_cap, n_tc = _chip_info()
    target_bytes = (8 << 20) if vmem_cap >= (96 << 20) else (6 << 20)

    if batch_tile is not None:
        bt = int(batch_tile)
    else:
        bt = _choose_batch_tile(B, T, C, itemsize, target_bytes, n_tc)
    bt = max(1, min(bt, B))
    grid = (pl.cdiv(B, bt),)        # last block may be partial; OOB writes masked

    # Explicit VMEM limit sized from the actual tiles (double-buffered) + slack,
    # clamped to the chip's physical capacity.
    need = 2 * (bt * T * C + bt * T + bt * C) * itemsize
    vmem_limit = int(min(vmem_cap, max(32 << 20, int(need * 1.5) + (2 << 20))))

    params = pltpu.CompilerParams(dimension_semantics=("parallel",),
                                  vmem_limit_bytes=vmem_limit)

    mask_bytes = B * T * itemsize if cleanframe is not None else 0
    cost = pl.CostEstimate(
        flops=B * T * C,
        transcendentals=0,
        bytes_accessed=B * T * C * itemsize + B * C * itemsize + mask_bytes)

    x_spec = pl.BlockSpec((bt, T, C), lambda b: (b, 0, 0))
    out_spec = pl.BlockSpec((bt, C), lambda b: (b, 0))
    out_shape = jax.ShapeDtypeStruct((B, C), dtype)

    if cleanframe is not None:
        # (B, T, 1) in input dtype: T stays on the sublane axis (matches x),
        # broadcast over C is a cheap lane broadcast in-kernel.
        mask = cleanframe.astype(dtype).reshape(B, T, 1)
        m_spec = pl.BlockSpec((bt, T, 1), lambda b: (b, 0, 0))
        out2d = pl.pallas_call(
            _masked_avg_kernel,
            out_shape=out_shape,
            grid_spec=pl.GridSpec(grid=grid, in_specs=[x_spec, m_spec],
                                  out_specs=out_spec),
            compiler_params=params,
            cost_estimate=cost,
        )(input_tensor, mask)
    elif consensus_type == "avg":
        out2d = pl.pallas_call(
            functools.partial(_avg_kernel, inv_t=1.0 / T),
            out_shape=out_shape,
            grid_spec=pl.GridSpec(grid=grid, in_specs=[x_spec], out_specs=out_spec),
            compiler_params=params,
            cost_estimate=cost,
        )(input_tensor)
    else:  # max
        out2d = pl.pallas_call(
            _max_kernel,
            out_shape=out_shape,
            grid_spec=pl.GridSpec(grid=grid, in_specs=[x_spec], out_specs=out_spec),
            compiler_params=params,
            cost_estimate=cost,
        )(input_tensor)

    # keepdim reshape is free layout plumbing outside the kernel.
    return out2d.reshape(B, 1, C)


# ---------------------------------------------------------------------------
# Demo / self-check
# ---------------------------------------------------------------------------

if __name__ == "__main__":
    key = jax.random.PRNGKey(0)
    B, T, C = 16, 8, 128  # batch, num_segments, num_classes

    kx, km = jax.random.split(key)
    x = jax.random.normal(kx, (B, T, C), dtype=jnp.float32)

    # Deterministic clean-frame mask; guarantee at least one True per row
    # (mirrors `assert cleanframe[i].sum() > 0` in the PyTorch module).
    cleanframe = jax.random.bernoulli(km, 0.6, (B, T))
    cleanframe = cleanframe.at[:, 0].set(True)

    # --- masked avg (main hot path); auto tiling and explicit single tile ---
    out_masked = jax.block_until_ready(segment_consensus(x, cleanframe, "avg", dim=1))
    out_masked_1tile = jax.block_until_ready(
        segment_consensus(x, cleanframe, "avg", dim=1, batch_tile=B))

    # --- plain avg / max / identity paths ---
    out_avg = jax.block_until_ready(segment_consensus(x, None, "avg"))
    out_max = jax.block_until_ready(segment_consensus(x, None, "max"))
    out_id = jax.block_until_ready(segment_consensus(x, None, "identity"))

    # Reference checks (plain JAX)
    m = cleanframe.astype(jnp.float32)[:, :, None]
    ref_masked = jnp.sum(x * m, axis=1, keepdims=True) / jnp.sum(m, axis=1, keepdims=True)
    ref_avg = jnp.mean(x, axis=1, keepdims=True)
    ref_max = jnp.max(x, axis=1, keepdims=True)

    assert out_masked.shape == (B, 1, C)
    assert jnp.allclose(out_masked, ref_masked, atol=1e-5, rtol=1e-5)
    assert jnp.allclose(out_masked_1tile, ref_masked, atol=1e-5, rtol=1e-5)
    assert jnp.allclose(out_avg, ref_avg, atol=1e-5, rtol=1e-5)
    assert jnp.allclose(out_max, ref_max, atol=1e-5, rtol=1e-5)
    assert out_id.shape == x.shape

    # --- awkward (non-8-divisible) batch with a forced partial last block ---
    B2 = 13
    kx2, km2 = jax.random.split(kx)
    x2 = jax.random.normal(kx2, (B2, T, C), dtype=jnp.float32)
    cf2 = jax.random.bernoulli(km2, 0.5, (B2, T)).at[:, 0].set(True)

    out2_masked = jax.block_until_ready(
        segment_consensus(x2, cf2, "avg", dim=1, batch_tile=8))   # grid=(2,), partial tail
    out2_max = jax.block_until_ready(
        segment_consensus(x2, None, "max", batch_tile=8))

    m2 = cf2.astype(jnp.float32)[:, :, None]
    ref2_masked = jnp.sum(x2 * m2, axis=1, keepdims=True) / jnp.sum(m2, axis=1, keepdims=True)
    ref2_max = jnp.max(x2, axis=1, keepdims=True)
    assert jnp.allclose(out2_masked, ref2_masked, atol=1e-5, rtol=1e-5)
    assert jnp.allclose(out2_max, ref2_max, atol=1e-5, rtol=1e-5)

    print("KERNEL_OK")
</pallas_src>

<mosaic_0001>
module attributes {stable_mosaic.version = 11 : i64} {
  func.func @_masked_avg_kernel(%arg0: i32, %arg1: memref<16x8x128xf32, #tpu.memory_space<vmem>>, %arg2: memref<16x8x1xf32, #tpu.memory_space<vmem>>, %arg3: memref<16x128xf32, #tpu.memory_space<vmem>>) attributes {dimension_semantics = [#tpu.dimension_semantics<parallel>], iteration_bounds = array<i64: 1>, scalar_prefetch = 0 : i64, scratch_operands = 0 : i64, tpu.core_type = #tpu.core_type<tc>, window_params = [{transform_indices = @transform_0, window_bounds = array<i64: 16, 8, 128>}, {transform_indices = @transform_1, window_bounds = array<i64: 16, 8, 1>}, {transform_indices = @transform_2, window_bounds = array<i64: 16, 128>}]} {
    %c0 = arith.constant 0 : index
    %c0_0 = arith.constant 0 : index
    %c0_1 = arith.constant 0 : index
    %0 = vector.load %arg2[%c0, %c0_0, %c0_1] : memref<16x8x1xf32, #tpu.memory_space<vmem>>, vector<16x1x1xf32>
    %1 = vector.shape_cast %0 : vector<16x1x1xf32> to vector<16x1xf32>
    %c0_2 = arith.constant 0 : index
    %c0_3 = arith.constant 0 : index
    %c0_4 = arith.constant 0 : index
    %2 = vector.load %arg1[%c0_2, %c0_3, %c0_4] : memref<16x8x128xf32, #tpu.memory_space<vmem>>, vector<16x1x128xf32>
    %3 = vector.shape_cast %2 : vector<16x1x128xf32> to vector<16x128xf32>
    %4 = vector.broadcast %1 : vector<16x1xf32> to vector<16x128xf32>
    %5 = arith.mulf %3, %4 : vector<16x128xf32>
    %c0_5 = arith.constant 0 : index
    %c1 = arith.constant 1 : index
    %c0_6 = arith.constant 0 : index
    %6 = vector.load %arg2[%c0_5, %c1, %c0_6] : memref<16x8x1xf32, #tpu.memory_space<vmem>>, vector<16x1x1xf32>
    %7 = vector.shape_cast %6 : vector<16x1x1xf32> to vector<16x1xf32>
    %c0_7 = arith.constant 0 : index
    %c1_8 = arith.constant 1 : index
    %c0_9 = arith.constant 0 : index
    %8 = vector.load %arg1[%c0_7, %c1_8, %c0_9] : memref<16x8x128xf32, #tpu.memory_space<vmem>>, vector<16x1x128xf32>
    %9 = vector.shape_cast %8 : vector<16x1x128xf32> to vector<16x128xf32>
    %10 = vector.broadcast %7 : vector<16x1xf32> to vector<16x128xf32>
    %11 = arith.mulf %9, %10 : vector<16x128xf32>
    %12 = arith.addf %5, %11 : vector<16x128xf32>
    %13 = arith.addf %1, %7 : vector<16x1xf32>
    %c0_10 = arith.constant 0 : index
    %c2 = arith.constant 2 : index
    %c0_11 = arith.constant 0 : index
    %14 = vector.load %arg2[%c0_10, %c2, %c0_11] : memref<16x8x1xf32, #tpu.memory_space<vmem>>, vector<16x1x1xf32>
    %15 = vector.shape_cast %14 : vector<16x1x1xf32> to vector<16x1xf32>
    %c0_12 = arith.constant 0 : index
    %c2_13 = arith.constant 2 : index
    %c0_14 = arith.constant 0 : index
    %16 = vector.load %arg1[%c0_12, %c2_13, %c0_14] : memref<16x8x128xf32, #tpu.memory_space<vmem>>, vector<16x1x128xf32>
    %17 = vector.shape_cast %16 : vector<16x1x128xf32> to vector<16x128xf32>
    %18 = vector.broadcast %15 : vector<16x1xf32> to vector<16x128xf32>
    %19 = arith.mulf %17, %18 : vector<16x128xf32>
    %20 = arith.addf %12, %19 : vector<16x128xf32>
    %21 = arith.addf %13, %15 : vector<16x1xf32>
    %c0_15 = arith.constant 0 : index
    %c3 = arith.constant 3 : index
    %c0_16 = arith.constant 0 : index
    %22 = vector.load %arg2[%c0_15, %c3, %c0_16] : memref<16x8x1xf32, #tpu.memory_space<vmem>>, vector<16x1x1xf32>
    %23 = vector.shape_cast %22 : vector<16x1x1xf32> to vector<16x1xf32>
    %c0_17 = arith.constant 0 : index
    %c3_18 = arith.constant 3 : index
    %c0_19 = arith.constant 0 : index
    %24 = vector.load %arg1[%c0_17, %c3_18, %c0_19] : memref<16x8x128xf32, #tpu.memory_space<vmem>>, vector<16x1x128xf32>
    %25 = vector.shape_cast %24 : vector<16x1x128xf32> to vector<16x128xf32>
    %26 = vector.broadcast %23 : vector<16x1xf32> to vector<16x128xf32>
    %27 = arith.mulf %25, %26 : vector<16x128xf32>
    %28 = arith.addf %20, %27 : vector<16x128xf32>
    %29 = arith.addf %21, %23 : vector<16x1xf32>
    %c0_20 = arith.constant 0 : index
    %c4 = arith.constant 4 : index
    %c0_21 = arith.constant 0 : index
    %30 = vector.load %arg2[%c0_20, %c4, %c0_21] : memref<16x8x1xf32, #tpu.memory_space<vmem>>, vector<16x1x1xf32>
    %31 = vector.shape_cast %30 : vector<16x1x1xf32> to vector<16x1xf32>
    %c0_22 = arith.constant 0 : index
    %c4_23 = arith.constant 4 : index
    %c0_24 = arith.constant 0 : index
    %32 = vector.load %arg1[%c0_22, %c4_23, %c0_24] : memref<16x8x128xf32, #tpu.memory_space<vmem>>, vector<16x1x128xf32>
    %33 = vector.shape_cast %32 : vector<16x1x128xf32> to vector<16x128xf32>
    %34 = vector.broadcast %31 : vector<16x1xf32> to vector<16x128xf32>
    %35 = arith.mulf %33, %34 : vector<16x128xf32>
    %36 = arith.addf %28, %35 : vector<16x128xf32>
    %37 = arith.addf %29, %31 : vector<16x1xf32>
    %c0_25 = arith.constant 0 : index
    %c5 = arith.constant 5 : index
    %c0_26 = arith.constant 0 : index
    %38 = vector.load %arg2[%c0_25, %c5, %c0_26] : memref<16x8x1xf32, #tpu.memory_space<vmem>>, vector<16x1x1xf32>
    %39 = vector.shape_cast %38 : vector<16x1x1xf32> to vector<16x1xf32>
    %c0_27 = arith.constant 0 : index
    %c5_28 = arith.constant 5 : index
    %c0_29 = arith.constant 0 : index
    %40 = vector.load %arg1[%c0_27, %c5_28, %c0_29] : memref<16x8x128xf32, #tpu.memory_space<vmem>>, vector<16x1x128xf32>
    %41 = vector.shape_cast %40 : vector<16x1x128xf32> to vector<16x128xf32>
    %42 = vector.broadcast %39 : vector<16x1xf32> to vector<16x128xf32>
    %43 = arith.mulf %41, %42 : vector<16x128xf32>
    %44 = arith.addf %36, %43 : vector<16x128xf32>
    %45 = arith.addf %37, %39 : vector<16x1xf32>
    %c0_30 = arith.constant 0 : index
    %c6 = arith.constant 6 : index
    %c0_31 = arith.constant 0 : index
    %46 = vector.load %arg2[%c0_30, %c6, %c0_31] : memref<16x8x1xf32, #tpu.memory_space<vmem>>, vector<16x1x1xf32>
    %47 = vector.shape_cast %46 : vector<16x1x1xf32> to vector<16x1xf32>
    %c0_32 = arith.constant 0 : index
    %c6_33 = arith.constant 6 : index
    %c0_34 = arith.constant 0 : index
    %48 = vector.load %arg1[%c0_32, %c6_33, %c0_34] : memref<16x8x128xf32, #tpu.memory_space<vmem>>, vector<16x1x128xf32>
    %49 = vector.shape_cast %48 : vector<16x1x128xf32> to vector<16x128xf32>
    %50 = vector.broadcast %47 : vector<16x1xf32> to vector<16x128xf32>
    %51 = arith.mulf %49, %50 : vector<16x128xf32>
    %52 = arith.addf %44, %51 : vector<16x128xf32>
    %53 = arith.addf %45, %47 : vector<16x1xf32>
    %c0_35 = arith.constant 0 : index
    %c7 = arith.constant 7 : index
    %c0_36 = arith.constant 0 : index
    %54 = vector.load %arg2[%c0_35, %c7, %c0_36] : memref<16x8x1xf32, #tpu.memory_space<vmem>>, vector<16x1x1xf32>
    %55 = vector.shape_cast %54 : vector<16x1x1xf32> to vector<16x1xf32>
    %c0_37 = arith.constant 0 : index
    %c7_38 = arith.constant 7 : index
    %c0_39 = arith.constant 0 : index
    %56 = vector.load %arg1[%c0_37, %c7_38, %c0_39] : memref<16x8x128xf32, #tpu.memory_space<vmem>>, vector<16x1x128xf32>
    %57 = vector.shape_cast %56 : vector<16x1x128xf32> to vector<16x128xf32>
    %58 = vector.broadcast %55 : vector<16x1xf32> to vector<16x128xf32>
    %59 = arith.mulf %57, %58 : vector<16x128xf32>
    %60 = arith.addf %52, %59 : vector<16x128xf32>
    %61 = arith.addf %53, %55 : vector<16x1xf32>
    %cst = arith.constant 1.000000e+00 : f32
    %62 = vector.broadcast %cst : f32 to vector<16x1xf32>
    %63 = arith.maximumf %61, %62 : vector<16x1xf32>
    %cst_40 = arith.constant 1.000000e+00 : f32
    %64 = vector.broadcast %cst_40 : f32 to vector<16x1xf32>
    %65 = arith.divf %64, %63 : vector<16x1xf32>
    %66 = vector.broadcast %65 : vector<16x1xf32> to vector<16x128xf32>
    %67 = arith.mulf %60, %66 : vector<16x128xf32>
    %c0_41 = arith.constant 0 : index
    %c0_42 = arith.constant 0 : index
    %68 = vector.load %arg3[%c0_41, %c0_42] : memref<16x128xf32, #tpu.memory_space<vmem>>, vector<16x128xf32>
    tpu.vector_store %arg3[%c0_41, %c0_42], %67 {strides = array<i32>} : memref<16x128xf32, #tpu.memory_space<vmem>>, vector<16x128xf32>,
    return
  }
  func.func @transform_0(%arg0: i32) -> (i32, i32, i32) {
    %c0_i32 = arith.constant 0 : i32
    %c0_i32_0 = arith.constant 0 : i32
    %c0_i32_1 = arith.constant 0 : i32
    return %arg0, %c0_i32, %c0_i32_0 : i32, i32, i32
  }
  func.func @transform_1(%arg0: i32) -> (i32, i32, i32) {
    %c0_i32 = arith.constant 0 : i32
    %c0_i32_0 = arith.constant 0 : i32
    %c0_i32_1 = arith.constant 0 : i32
    return %arg0, %c0_i32, %c0_i32_0 : i32, i32, i32
  }
  func.func @transform_2(%arg0: i32) -> (i32, i32) {
    %c0_i32 = arith.constant 0 : i32
    %c0_i32_0 = arith.constant 0 : i32
    return %arg0, %c0_i32 : i32, i32
  }
}

</mosaic_0001>

<llo_original>
// kernel: tpu_custom_call.1
$region0: #{tpu_custom_call.1}
  #allocation0 [shape = 'u32[]', space=smem, size = 0x4, offset = 0x4, fixed_abs, tag = 'smem constant byte address 0x4 - core index']
  #allocation1 [shape = 'u32[72,128]{1,0:T(1,128)}', space=vmem, size = 0x9000, scoped, tag = 'internal scratch']
  %s0 = inlined_call_operand.vmem [shape: f32[16,8,128], index: 0, kind: input, shape index: {}]
  %s1 = inlined_call_operand.vmem [shape: f32[16,8,1], index: 1, kind: input, shape index: {}]
  %s2 = inlined_call_operand.hbm [shape: f32[16,128], index: 2, kind: output, shape index: {}]
  %s3 = sld [smem:[#allocation0]]
  $region18: #{tpu_custom_call.1} parent=0
    _
  %s5 = ssub.s32 1, %s3
  %s6 = scalar_select 0, %s5, %s3
  $region1: #{tpu_custom_call.1} parent=0
    #allocation2 [shape = 'u8[8192]{0}', space=vmem, size = 0x2000, scoped, tag = 'output window, operand 0, single buffered']
    #allocation3 [shape = 's32[1]{0}', space=sflag, size = 0x4, scoped, tag = 'scoped memory for tpu_custom_call.1']
    %7 = vsyncpa [#allocation3], 0
    // Predicated region
    $region2: #{tpu_custom_call.1} parent=1 // pred_check
      _
    $region3: #{tpu_custom_call.1} parent=1 // pred_check_branch
      %9 = sbr.rel (0) target = $region5
    $region4: #{tpu_custom_call.1} parent=1 // pred_region
      _
    $region5: #{tpu_custom_call.1} parent=1 // pred_fallthru
      _
    // Predicated region
    $region6: #{tpu_custom_call.1} parent=1 // pred_check
      _
    $region7: #{tpu_custom_call.1} parent=1 // pred_check_branch
      %11 = sbr.rel (0) target = $region9
    $region8: #{tpu_custom_call.1} parent=1 // pred_region
      _
    $region9: #{tpu_custom_call.1} parent=1 // pred_fallthru
      _
    %v12 = vld [vmem:[%s1] sm:$0x1]
    %v13 = vld [vmem:[%s1 + $0x8] sm:$0x1]
    %v14 = vld [vmem:[%s1 + $0x10] sm:$0x1]
    %v15 = vld [vmem:[%s1 + $0x18] sm:$0x1]
    %v16 = vld [vmem:[%s1 + $0x20] sm:$0x1]
    %v17 = vld [vmem:[%s1 + $0x28] sm:$0x1]
    %v18 = vld [vmem:[%s1 + $0x30] sm:$0x1]
    %v19 = vld [vmem:[%s1 + $0x38] sm:$0x1]
    %v20 = vld [vmem:[%s1 + $0x40] sm:$0x1]
    %v21 = vld [vmem:[%s1 + $0x48] sm:$0x1]
    %v22 = vld [vmem:[%s1 + $0x50] sm:$0x1]
    %v23 = vld [vmem:[%s1 + $0x58] sm:$0x1]
    %v24 = vld [vmem:[%s1 + $0x60] sm:$0x1]
    %v25 = vld [vmem:[%s1 + $0x68] sm:$0x1]
    %v26 = vld [vmem:[%s1 + $0x70] sm:$0x1]
    %v27 = vld [vmem:[%s1 + $0x78] sm:$0x1]
    %v28 = vld [vmem:[%s0] sm:$0x1]
    %v29 = vld [vmem:[%s0 + $0x8] sm:$0x1]
    %v30 = vld [vmem:[%s0 + $0x10] sm:$0x1]
    %v31 = vld [vmem:[%s0 + $0x18] sm:$0x1]
    %v32 = vld [vmem:[%s0 + $0x20] sm:$0x1]
    %v33 = vld [vmem:[%s0 + $0x28] sm:$0x1]
    %v34 = vld [vmem:[%s0 + $0x30] sm:$0x1]
    %v35 = vld [vmem:[%s0 + $0x38] sm:$0x1]
    %v36 = vld [vmem:[%s0 + $0x40] sm:$0x1]
    %v37 = vld [vmem:[%s0 + $0x48] sm:$0x1]
    %v38 = vld [vmem:[%s0 + $0x50] sm:$0x1]
    %v39 = vld [vmem:[%s0 + $0x58] sm:$0x1]
    %v40 = vld [vmem:[%s0 + $0x60] sm:$0x1]
    %v41 = vld [vmem:[%s0 + $0x68] sm:$0x1]
    %v42 = vld [vmem:[%s0 + $0x70] sm:$0x1]
    %v43 = vld [vmem:[%s0 + $0x78] sm:$0x1]
    %45 = vset.pattern.permute.xlu0 0
    %46 = vperm.xlu0 %45, %v12
    %v47 = vpop.permute.xlu0 %46
    %50 = vset.pattern.permute.xlu0 0
    %51 = vperm.xlu0 %50, %v13
    %v52 = vpop.permute.xlu0 %51
    %55 = vset.pattern.permute.xlu0 0
    %56 = vperm.xlu0 %55, %v14
    %v57 = vpop.permute.xlu0 %56
    %60 = vset.pattern.permute.xlu0 0
    %61 = vperm.xlu0 %60, %v15
    %v62 = vpop.permute.xlu0 %61
    %65 = vset.pattern.permute.xlu0 0
    %66 = vperm.xlu0 %65, %v16
    %v67 = vpop.permute.xlu0 %66
    %70 = vset.pattern.permute.xlu0 0
    %71 = vperm.xlu0 %70, %v17
    %v72 = vpop.permute.xlu0 %71
    %75 = vset.pattern.permute.xlu0 0
    %76 = vperm.xlu0 %75, %v18
    %v77 = vpop.permute.xlu0 %76
    %80 = vset.pattern.permute.xlu0 0
    %81 = vperm.xlu0 %80, %v19
    %v82 = vpop.permute.xlu0 %81
    %85 = vset.pattern.permute.xlu0 0
    %86 = vperm.xlu0 %85, %v20
    %v87 = vpop.permute.xlu0 %86
    %90 = vset.pattern.permute.xlu0 0
    %91 = vperm.xlu0 %90, %v21
    %v92 = vpop.permute.xlu0 %91
    %95 = vset.pattern.permute.xlu0 0
    %96 = vperm.xlu0 %95, %v22
    %v97 = vpop.permute.xlu0 %96
    %100 = vset.pattern.permute.xlu0 0
    %101 = vperm.xlu0 %100, %v23
    %v102 = vpop.permute.xlu0 %101
    %105 = vset.pattern.permute.xlu0 0
    %106 = vperm.xlu0 %105, %v24
    %v107 = vpop.permute.xlu0 %106
    %110 = vset.pattern.permute.xlu0 0
    %111 = vperm.xlu0 %110, %v25
    %v112 = vpop.permute.xlu0 %111
    %115 = vset.pattern.permute.xlu0 0
    %116 = vperm.xlu0 %115, %v26
    %v117 = vpop.permute.xlu0 %116
    %120 = vset.pattern.permute.xlu0 0
    %121 = vperm.xlu0 %120, %v27
    %v122 = vpop.permute.xlu0 %121
    %v124 = vmul.f32 %v28, %v47
    %v125 = vmul.f32 %v29, %v52
    %v126 = vmul.f32 %v30, %v57
    %v127 = vmul.f32 %v31, %v62
    %v128 = vmul.f32 %v32, %v67
    %v129 = vmul.f32 %v33, %v72
    %v130 = vmul.f32 %v34, %v77
    %v131 = vmul.f32 %v35, %v82
    %v132 = vmul.f32 %v36, %v87
    %v133 = vmul.f32 %v37, %v92
    %v134 = vmul.f32 %v38, %v97
    %v135 = vmul.f32 %v39, %v102
    %v136 = vmul.f32 %v40, %v107
    %v137 = vmul.f32 %v41, %v112
    %v138 = vmul.f32 %v42, %v117
    %v139 = vmul.f32 %v43, %v122
    %v140 = vld [vmem:[%s1 + $0x1] sm:$0x1]
    %v141 = vld [vmem:[%s1 + $0x9] sm:$0x1]
    %v142 = vld [vmem:[%s1 + $0x11] sm:$0x1]
    %v143 = vld [vmem:[%s1 + $0x19] sm:$0x1]
    %v144 = vld [vmem:[%s1 + $0x21] sm:$0x1]
    %v145 = vld [vmem:[%s1 + $0x29] sm:$0x1]
    %v146 = vld [vmem:[%s1 + $0x31] sm:$0x1]
    %v147 = vld [vmem:[%s1 + $0x39] sm:$0x1]
    %v148 = vld [vmem:[%s1 + $0x41] sm:$0x1]
    %v149 = vld [vmem:[%s1 + $0x49] sm:$0x1]
    %v150 = vld [vmem:[%s1 + $0x51] sm:$0x1]
    %v151 = vld [vmem:[%s1 + $0x59] sm:$0x1]
    %v152 = vld [vmem:[%s1 + $0x61] sm:$0x1]
    %v153 = vld [vmem:[%s1 + $0x69] sm:$0x1]
    %v154 = vld [vmem:[%s1 + $0x71] sm:$0x1]
    %v155 = vld [vmem:[%s1 + $0x79] sm:$0x1]
    %v156 = vld [vmem:[%s0 + $0x1] sm:$0x1]
    %v157 = vld [vmem:[%s0 + $0x9] sm:$0x1]
    %v158 = vld [vmem:[%s0 + $0x11] sm:$0x1]
    %v159 = vld [vmem:[%s0 + $0x19] sm:$0x1]
    %v160 = vld [vmem:[%s0 + $0x21] sm:$0x1]
    %v161 = vld [vmem:[%s0 + $0x29] sm:$0x1]
    %v162 = vld [vmem:[%s0 + $0x31] sm:$0x1]
    %v163 = vld [vmem:[%s0 + $0x39] sm:$0x1]
    %v164 = vld [vmem:[%s0 + $0x41] sm:$0x1]
    %v165 = vld [vmem:[%s0 + $0x49] sm:$0x1]
    %v166 = vld [vmem:[%s0 + $0x51] sm:$0x1]
    %v167 = vld [vmem:[%s0 + $0x59] sm:$0x1]
    %v168 = vld [vmem:[%s0 + $0x61] sm:$0x1]
    %v169 = vld [vmem:[%s0 + $0x69] sm:$0x1]
    %v170 = vld [vmem:[%s0 + $0x71] sm:$0x1]
    %v171 = vld [vmem:[%s0 + $0x79] sm:$0x1]
    %173 = vset.pattern.permute.xlu0 0
    %174 = vperm.xlu0 %173, %v140
    %v175 = vpop.permute.xlu0 %174
    %178 = vset.pattern.permute.xlu0 0
    %179 = vperm.xlu0 %178, %v141
    %v180 = vpop.permute.xlu0 %179
    %183 = vset.pattern.permute.xlu0 0
    %184 = vperm.xlu0 %183, %v142
    %v185 = vpop.permute.xlu0 %184
    %188 = vset.pattern.permute.xlu0 0
    %189 = vperm.xlu0 %188, %v143
    %v190 = vpop.permute.xlu0 %189
    %193 = vset.pattern.permute.xlu0 0
    %194 = vperm.xlu0 %193, %v144
    %v195 = vpop.permute.xlu0 %194
    %198 = vset.pattern.permute.xlu0 0
    %199 = vperm.xlu0 %198, %v145
    %v200 = vpop.permute.xlu0 %199
    %203 = vset.pattern.permute.xlu0 0
    %204 = vperm.xlu0 %203, %v146
    %v205 = vpop.permute.xlu0 %204
    %208 = vset.pattern.permute.xlu0 0
    %209 = vperm.xlu0 %208, %v147
    %v210 = vpop.permute.xlu0 %209
    %213 = vset.pattern.permute.xlu0 0
    %214 = vperm.xlu0 %213, %v148
    %v215 = vpop.permute.xlu0 %214
    %218 = vset.pattern.permute.xlu0 0
    %219 = vperm.xlu0 %218, %v149
    %v220 = vpop.permute.xlu0 %219
    %223 = vset.pattern.permute.xlu0 0
    %224 = vperm.xlu0 %223, %v150
    %v225 = vpop.permute.xlu0 %224
    %228 = vset.pattern.permute.xlu0 0
    %229 = vperm.xlu0 %228, %v151
    %v230 = vpop.permute.xlu0 %229
    %233 = vset.pattern.permute.xlu0 0
    %234 = vperm.xlu0 %233, %v152
    %v235 = vpop.permute.xlu0 %234
    %238 = vset.pattern.permute.xlu0 0
    %239 = vperm.xlu0 %238, %v153
    %v240 = vpop.permute.xlu0 %239
    %243 = vset.pattern.permute.xlu0 0
    %244 = vperm.xlu0 %243, %v154
    %v245 = vpop.permute.xlu0 %244
    %248 = vset.pattern.permute.xlu0 0
    %249 = vperm.xlu0 %248, %v155
    %v250 = vpop.permute.xlu0 %249
    %v252 = vmul.f32 %v156, %v175
    %v253 = vmul.f32 %v157, %v180
    %v254 = vmul.f32 %v158, %v185
    %v255 = vmul.f32 %v159, %v190
    %v256 = vmul.f32 %v160, %v195
    %v257 = vmul.f32 %v161, %v200
    %v258 = vmul.f32 %v162, %v205
    %v259 = vmul.f32 %v163, %v210
    %v260 = vmul.f32 %v164, %v215
    %v261 = vmul.f32 %v165, %v220
    %v262 = vmul.f32 %v166, %v225
    %v263 = vmul.f32 %v167, %v230
    %v264 = vmul.f32 %v168, %v235
    %v265 = vmul.f32 %v169, %v240
    %v266 = vmul.f32 %v170, %v245
    %v267 = vmul.f32 %v171, %v250
    %v268 = vadd.f32 %v124, %v252
    %v269 = vadd.f32 %v125, %v253
    %v270 = vadd.f32 %v126, %v254
    %v271 = vadd.f32 %v127, %v255
    %v272 = vadd.f32 %v128, %v256
    %v273 = vadd.f32 %v129, %v257
    %v274 = vadd.f32 %v130, %v258
    %v275 = vadd.f32 %v131, %v259
    %v276 = vadd.f32 %v132, %v260
    %v277 = vadd.f32 %v133, %v261
    %v278 = vadd.f32 %v134, %v262
    %v279 = vadd.f32 %v135, %v263
    %v280 = vadd.f32 %v136, %v264
    %v281 = vadd.f32 %v137, %v265
    %v282 = vadd.f32 %v138, %v266
    %v283 = vadd.f32 %v139, %v267
    %v284 = vadd.f32 %v12, %v140
    %v285 = vadd.f32 %v13, %v141
    %v286 = vadd.f32 %v14, %v142
    %v287 = vadd.f32 %v15, %v143
    %v288 = vadd.f32 %v16, %v144
    %v289 = vadd.f32 %v17, %v145
    %v290 = vadd.f32 %v18, %v146
    %v291 = vadd.f32 %v19, %v147
    %v292 = vadd.f32 %v20, %v148
    %v293 = vadd.f32 %v21, %v149
    %v294 = vadd.f32 %v22, %v150
    %v295 = vadd.f32 %v23, %v151
    %v296 = vadd.f32 %v24, %v152
    %v297 = vadd.f32 %v25, %v153
    %v298 = vadd.f32 %v26, %v154
    %v299 = vadd.f32 %v27, %v155
    %v300 = vld [vmem:[%s1 + $0x2] sm:$0x1]
    %v301 = vld [vmem:[%s1 + $0xa] sm:$0x1]
    %v302 = vld [vmem:[%s1 + $0x12] sm:$0x1]
    %v303 = vld [vmem:[%s1 + $0x1a] sm:$0x1]
    %v304 = vld [vmem:[%s1 + $0x22] sm:$0x1]
    %v305 = vld [vmem:[%s1 + $0x2a] sm:$0x1]
    %v306 = vld [vmem:[%s1 + $0x32] sm:$0x1]
    %v307 = vld [vmem:[%s1 + $0x3a] sm:$0x1]
    %v308 = vld [vmem:[%s1 + $0x42] sm:$0x1]
    %v309 = vld [vmem:[%s1 + $0x4a] sm:$0x1]
    %v310 = vld [vmem:[%s1 + $0x52] sm:$0x1]
    %v311 = vld [vmem:[%s1 + $0x5a] sm:$0x1]
    %v312 = vld [vmem:[%s1 + $0x62] sm:$0x1]
    %v313 = vld [vmem:[%s1 + $0x6a] sm:$0x1]
    %v314 = vld [vmem:[%s1 + $0x72] sm:$0x1]
    %v315 = vld [vmem:[%s1 + $0x7a] sm:$0x1]
    %v316 = vld [vmem:[%s0 + $0x2] sm:$0x1]
    %v317 = vld [vmem:[%s0 + $0xa] sm:$0x1]
    %v318 = vld [vmem:[%s0 + $0x12] sm:$0x1]
    %v319 = vld [vmem:[%s0 + $0x1a] sm:$0x1]
    %v320 = vld [vmem:[%s0 + $0x22] sm:$0x1]
    %v321 = vld [vmem:[%s0 + $0x2a] sm:$0x1]
    %v322 = vld [vmem:[%s0 + $0x32] sm:$0x1]
    %v323 = vld [vmem:[%s0 + $0x3a] sm:$0x1]
    %v324 = vld [vmem:[%s0 + $0x42] sm:$0x1]
    %v325 = vld [vmem:[%s0 + $0x4a] sm:$0x1]
    %v326 = vld [vmem:[%s0 + $0x52] sm:$0x1]
    %v327 = vld [vmem:[%s0 + $0x5a] sm:$0x1]
    %v328 = vld [vmem:[%s0 + $0x62] sm:$0x1]
    %v329 = vld [vmem:[%s0 + $0x6a] sm:$0x1]
    %v330 = vld [vmem:[%s0 + $0x72] sm:$0x1]
    %v331 = vld [vmem:[%s0 + $0x7a] sm:$0x1]
    %333 = vset.pattern.permute.xlu0 0
    %334 = vperm.xlu0 %333, %v300
    %v335 = vpop.permute.xlu0 %334
    %338 = vset.pattern.permute.xlu0 0
    %339 = vperm.xlu0 %338, %v301
    %v340 = vpop.permute.xlu0 %339
    %343 = vset.pattern.permute.xlu0 0
    %344 = vperm.xlu0 %343, %v302
    %v345 = vpop.permute.xlu0 %344
    %348 = vset.pattern.permute.xlu0 0
    %349 = vperm.xlu0 %348, %v303
    %v350 = vpop.permute.xlu0 %349
    %353 = vset.pattern.permute.xlu0 0
    %354 = vperm.xlu0 %353, %v304
    %v355 = vpop.permute.xlu0 %354
    %358 = vset.pattern.permute.xlu0 0
    %359 = vperm.xlu0 %358, %v305
    %v360 = vpop.permute.xlu0 %359
    %363 = vset.pattern.permute.xlu0 0
    %364 = vperm.xlu0 %363, %v306
    %v365 = vpop.permute.xlu0 %364
    %368 = vset.pattern.permute.xlu0 0
    %369 = vperm.xlu0 %368, %v307
    %v370 = vpop.permute.xlu0 %369
    %373 = vset.pattern.permute.xlu0 0
    %374 = vperm.xlu0 %373, %v308
    %v375 = vpop.permute.xlu0 %374
    %378 = vset.pattern.permute.xlu0 0
    %379 = vperm.xlu0 %378, %v309
    %v380 = vpop.permute.xlu0 %379
    %383 = vset.pattern.permute.xlu0 0
    %384 = vperm.xlu0 %383, %v310
    %v385 = vpop.permute.xlu0 %384
    %388 = vset.pattern.permute.xlu0 0
    %389 = vperm.xlu0 %388, %v311
    %v390 = vpop.permute.xlu0 %389
    %393 = vset.pattern.permute.xlu0 0
    %394 = vperm.xlu0 %393, %v312
    %v395 = vpop.permute.xlu0 %394
    %398 = vset.pattern.permute.xlu0 0
    %399 = vperm.xlu0 %398, %v313
    %v400 = vpop.permute.xlu0 %399
    %403 = vset.pattern.permute.xlu0 0
    %404 = vperm.xlu0 %403, %v314
    %v405 = vpop.permute.xlu0 %404
    %408 = vset.pattern.permute.xlu0 0
    %409 = vperm.xlu0 %408, %v315
    %v410 = vpop.permute.xlu0 %409
    %v412 = vmul.f32 %v316, %v335
    %v413 = vmul.f32 %v317, %v340
    %v414 = vmul.f32 %v318, %v345
    %v415 = vmul.f32 %v319, %v350
    %v416 = vmul.f32 %v320, %v355
    %v417 = vmul.f32 %v321, %v360
    %v418 = vmul.f32 %v322, %v365
    %v419 = vmul.f32 %v323, %v370
    %v420 = vmul.f32 %v324, %v375
    %v421 = vmul.f32 %v325, %v380
    %v422 = vmul.f32 %v326, %v385
    %v423 = vmul.f32 %v327, %v390
    %v424 = vmul.f32 %v328, %v395
    %v425 = vmul.f32 %v329, %v400
    %v426 = vmul.f32 %v330, %v405
    %v427 = vmul.f32 %v331, %v410
    %v428 = vadd.f32 %v268, %v412
    %v429 = vadd.f32 %v269, %v413
    %v430 = vadd.f32 %v270, %v414
    %v431 = vadd.f32 %v271, %v415
    %v432 = vadd.f32 %v272, %v416
    %v433 = vadd.f32 %v273, %v417
    %v434 = vadd.f32 %v274, %v418
    %v435 = vadd.f32 %v275, %v419
    %v436 = vadd.f32 %v276, %v420
    %v437 = vadd.f32 %v277, %v421
    %v438 = vadd.f32 %v278, %v422
    %v439 = vadd.f32 %v279, %v423
    %v440 = vadd.f32 %v280, %v424
    %v441 = vadd.f32 %v281, %v425
    %v442 = vadd.f32 %v282, %v426
    %v443 = vadd.f32 %v283, %v427
    %v444 = vadd.f32 %v284, %v300
    %v445 = vadd.f32 %v285, %v301
    %v446 = vadd.f32 %v286, %v302
    %v447 = vadd.f32 %v287, %v303
    %v448 = vadd.f32 %v288, %v304
    %v449 = vadd.f32 %v289, %v305
    %v450 = vadd.f32 %v290, %v306
    %v451 = vadd.f32 %v291, %v307
    %v452 = vadd.f32 %v292, %v308
    %v453 = vadd.f32 %v293, %v309
    %v454 = vadd.f32 %v294, %v310
    %v455 = vadd.f32 %v295, %v311
    %v456 = vadd.f32 %v296, %v312
    %v457 = vadd.f32 %v297, %v313
    %v458 = vadd.f32 %v298, %v314
    %v459 = vadd.f32 %v299, %v315
    %v460 = vld [vmem:[%s1 + $0x3] sm:$0x1]
    %v461 = vld [vmem:[%s1 + $0xb] sm:$0x1]
    %v462 = vld [vmem:[%s1 + $0x13] sm:$0x1]
    %v463 = vld [vmem:[%s1 + $0x1b] sm:$0x1]
    %v464 = vld [vmem:[%s1 + $0x23] sm:$0x1]
    %v465 = vld [vmem:[%s1 + $0x2b] sm:$0x1]
    %v466 = vld [vmem:[%s1 + $0x33] sm:$0x1]
    %v467 = vld [vmem:[%s1 + $0x3b] sm:$0x1]
    %v468 = vld [vmem:[%s1 + $0x43] sm:$0x1]
    %v469 = vld [vmem:[%s1 + $0x4b] sm:$0x1]
    %v470 = vld [vmem:[%s1 + $0x53] sm:$0x1]
    %v471 = vld [vmem:[%s1 + $0x5b] sm:$0x1]
    %v472 = vld [vmem:[%s1 + $0x63] sm:$0x1]
    %v473 = vld [vmem:[%s1 + $0x6b] sm:$0x1]
    %v474 = vld [vmem:[%s1 + $0x73] sm:$0x1]
    %v475 = vld [vmem:[%s1 + $0x7b] sm:$0x1]
    %v476 = vld [vmem:[%s0 + $0x3] sm:$0x1]
    %v477 = vld [vmem:[%s0 + $0xb] sm:$0x1]
    %v478 = vld [vmem:[%s0 + $0x13] sm:$0x1]
    %v479 = vld [vmem:[%s0 + $0x1b] sm:$0x1]
    %v480 = vld [vmem:[%s0 + $0x23] sm:$0x1]
    %v481 = vld [vmem:[%s0 + $0x2b] sm:$0x1]
    %v482 = vld [vmem:[%s0 + $0x33] sm:$0x1]
    %v483 = vld [vmem:[%s0 + $0x3b] sm:$0x1]
    %v484 = vld [vmem:[%s0 + $0x43] sm:$0x1]
    %v485 = vld [vmem:[%s0 + $0x4b] sm:$0x1]
    %v486 = vld [vmem:[%s0 + $0x53] sm:$0x1]
    %v487 = vld [vmem:[%s0 + $0x5b] sm:$0x1]
    %v488 = vld [vmem:[%s0 + $0x63] sm:$0x1]
    %v489 = vld [vmem:[%s0 + $0x6b] sm:$0x1]
    %v490 = vld [vmem:[%s0 + $0x73] sm:$0x1]
    %v491 = vld [vmem:[%s0 + $0x7b] sm:$0x1]
    %493 = vset.pattern.permute.xlu0 0
    %494 = vperm.xlu0 %493, %v460
    %v495 = vpop.permute.xlu0 %494
    %498 = vset.pattern.permute.xlu0 0
    %499 = vperm.xlu0 %498, %v461
    %v500 = vpop.permute.xlu0 %499
    %503 = vset.pattern.permute.xlu0 0
    %504 = vperm.xlu0 %503, %v462
    %v505 = vpop.permute.xlu0 %504
    %508 = vset.pattern.permute.xlu0 0
    %509 = vperm.xlu0 %508, %v463
    %v510 = vpop.permute.xlu0 %509
    %513 = vset.pattern.permute.xlu0 0
    %514 = vperm.xlu0 %513, %v464
    %v515 = vpop.permute.xlu0 %514
    %518 = vset.pattern.permute.xlu0 0
    %519 = vperm.xlu0 %518, %v465
    %v520 = vpop.permute.xlu0 %519
    %523 = vset.pattern.permute.xlu0 0
    %524 = vperm.xlu0 %523, %v466
    %v525 = vpop.permute.xlu0 %524
    %528 = vset.pattern.permute.xlu0 0
    %529 = vperm.xlu0 %528, %v467
    %v530 = vpop.permute.xlu0 %529
    %533 = vset.pattern.permute.xlu0 0
    %534 = vperm.xlu0 %533, %v468
    %v535 = vpop.permute.xlu0 %534
    %538 = vset.pattern.permute.xlu0 0
    %539 = vperm.xlu0 %538, %v469
    %v540 = vpop.permute.xlu0 %539
    %543 = vset.pattern.permute.xlu0 0
    %544 = vperm.xlu0 %543, %v470
    %v545 = vpop.permute.xlu0 %544
    %548 = vset.pattern.permute.xlu0 0
    %549 = vperm.xlu0 %548, %v471
    %v550 = vpop.permute.xlu0 %549
    %553 = vset.pattern.permute.xlu0 0
    %554 = vperm.xlu0 %553, %v472
    %v555 = vpop.permute.xlu0 %554
    %558 = vset.pattern.permute.xlu0 0
    %559 = vperm.xlu0 %558, %v473
    %v560 = vpop.permute.xlu0 %559
    %563 = vset.pattern.permute.xlu0 0
    %564 = vperm.xlu0 %563, %v474
    %v565 = vpop.permute.xlu0 %564
    %568 = vset.pattern.permute.xlu0 0
    %569 = vperm.xlu0 %568, %v475
    %v570 = vpop.permute.xlu0 %569
    %v572 = vmul.f32 %v476, %v495
    %v573 = vmul.f32 %v477, %v500
    %v574 = vmul.f32 %v478, %v505
    %v575 = vmul.f32 %v479, %v510
    %v576 = vmul.f32 %v480, %v515
    %v577 = vmul.f32 %v481, %v520
    %v578 = vmul.f32 %v482, %v525
    %v579 = vmul.f32 %v483, %v530
    %v580 = vmul.f32 %v484, %v535
    %v581 = vmul.f32 %v485, %v540
    %v582 = vmul.f32 %v486, %v545
    %v583 = vmul.f32 %v487, %v550
    %v584 = vmul.f32 %v488, %v555
    %v585 = vmul.f32 %v489, %v560
    %v586 = vmul.f32 %v490, %v565
    %v587 = vmul.f32 %v491, %v570
    %v588 = vadd.f32 %v428, %v572
    %v589 = vadd.f32 %v429, %v573
    %v590 = vadd.f32 %v430, %v574
    %v591 = vadd.f32 %v431, %v575
    %v592 = vadd.f32 %v432, %v576
    %v593 = vadd.f32 %v433, %v577
    %v594 = vadd.f32 %v434, %v578
    %v595 = vadd.f32 %v435, %v579
    %v596 = vadd.f32 %v436, %v580
    %v597 = vadd.f32 %v437, %v581
    %v598 = vadd.f32 %v438, %v582
    %v599 = vadd.f32 %v439, %v583
    %v600 = vadd.f32 %v440, %v584
    %v601 = vadd.f32 %v441, %v585
    %v602 = vadd.f32 %v442, %v586
    %v603 = vadd.f32 %v443, %v587
    %v604 = vadd.f32 %v444, %v460
    %v605 = vadd.f32 %v445, %v461
    %v606 = vadd.f32 %v446, %v462
    %v607 = vadd.f32 %v447, %v463
    %v608 = vadd.f32 %v448, %v464
    %v609 = vadd.f32 %v449, %v465
    %v610 = vadd.f32 %v450, %v466
    %v611 = vadd.f32 %v451, %v467
    %v612 = vadd.f32 %v452, %v468
    %v613 = vadd.f32 %v453, %v469
    %v614 = vadd.f32 %v454, %v470
    %v615 = vadd.f32 %v455, %v471
    %v616 = vadd.f32 %v456, %v472
    %v617 = vadd.f32 %v457, %v473
    %v618 = vadd.f32 %v458, %v474
    %v619 = vadd.f32 %v459, %v475
    %v620 = vld [vmem:[%s1 + $0x4] sm:$0x1]
    %v621 = vld [vmem:[%s1 + $0xc] sm:$0x1]
    %v622 = vld [vmem:[%s1 + $0x14] sm:$0x1]
    %v623 = vld [vmem:[%s1 + $0x1c] sm:$0x1]
    %v624 = vld [vmem:[%s1 + $0x24] sm:$0x1]
    %v625 = vld [vmem:[%s1 + $0x2c] sm:$0x1]
    %v626 = vld [vmem:[%s1 + $0x34] sm:$0x1]
    %v627 = vld [vmem:[%s1 + $0x3c] sm:$0x1]
    %v628 = vld [vmem:[%s1 + $0x44] sm:$0x1]
    %v629 = vld [vmem:[%s1 + $0x4c] sm:$0x1]
    %v630 = vld [vmem:[%s1 + $0x54] sm:$0x1]
    %v631 = vld [vmem:[%s1 + $0x5c] sm:$0x1]
    %v632 = vld [vmem:[%s1 + $0x64] sm:$0x1]
    %v633 = vld [vmem:[%s1 + $0x6c] sm:$0x1]
    %v634 = vld [vmem:[%s1 + $0x74] sm:$0x1]
    %v635 = vld [vmem:[%s1 + $0x7c] sm:$0x1]
    %v636 = vld [vmem:[%s0 + $0x4] sm:$0x1]
    %v637 = vld [vmem:[%s0 + $0xc] sm:$0x1]
    %v638 = vld [vmem:[%s0 + $0x14] sm:$0x1]
    %v639 = vld [vmem:[%s0 + $0x1c] sm:$0x1]
    %v640 = vld [vmem:[%s0 + $0x24] sm:$0x1]
    %v641 = vld [vmem:[%s0 + $0x2c] sm:$0x1]
    %v642 = vld [vmem:[%s0 + $0x34] sm:$0x1]
    %v643 = vld [vmem:[%s0 + $0x3c] sm:$0x1]
    %v644 = vld [vmem:[%s0 + $0x44] sm:$0x1]
    %v645 = vld [vmem:[%s0 + $0x4c] sm:$0x1]
    %v646 = vld [vmem:[%s0 + $0x54] sm:$0x1]
    %v647 = vld [vmem:[%s0 + $0x5c] sm:$0x1]
    %v648 = vld [vmem:[%s0 + $0x64] sm:$0x1]
    %v649 = vld [vmem:[%s0 + $0x6c] sm:$0x1]
    %v650 = vld [vmem:[%s0 + $0x74] sm:$0x1]
    %v651 = vld [vmem:[%s0 + $0x7c] sm:$0x1]
    %653 = vset.pattern.permute.xlu0 0
    %654 = vperm.xlu0 %653, %v620
    %v655 = vpop.permute.xlu0 %654
    %658 = vset.pattern.permute.xlu0 0
    %659 = vperm.xlu0 %658, %v621
    %v660 = vpop.permute.xlu0 %659
    %663 = vset.pattern.permute.xlu0 0
    %664 = vperm.xlu0 %663, %v622
    %v665 = vpop.permute.xlu0 %664
    %668 = vset.pattern.permute.xlu0 0
    %669 = vperm.xlu0 %668, %v623
    %v670 = vpop.permute.xlu0 %669
    %673 = vset.pattern.permute.xlu0 0
    %674 = vperm.xlu0 %673, %v624
    %v675 = vpop.permute.xlu0 %674
    %678 = vset.pattern.permute.xlu0 0
    %679 = vperm.xlu0 %678, %v625
    %v680 = vpop.permute.xlu0 %679
    %683 = vset.pattern.permute.xlu0 0
    %684 = vperm.xlu0 %683, %v626
    %v685 = vpop.permute.xlu0 %684
    %688 = vset.pattern.permute.xlu0 0
    %689 = vperm.xlu0 %688, %v627
    %v690 = vpop.permute.xlu0 %689
    %693 = vset.pattern.permute.xlu0 0
    %694 = vperm.xlu0 %693, %v628
    %v695 = vpop.permute.xlu0 %694
    %698 = vset.pattern.permute.xlu0 0
    %699 = vperm.xlu0 %698, %v629
    %v700 = vpop.permute.xlu0 %699
    %703 = vset.pattern.permute.xlu0 0
    %704 = vperm.xlu0 %703, %v630
    %v705 = vpop.permute.xlu0 %704
    %708 = vset.pattern.permute.xlu0 0
    %709 = vperm.xlu0 %708, %v631
    %v710 = vpop.permute.xlu0 %709
    %713 = vset.pattern.permute.xlu0 0
    %714 = vperm.xlu0 %713, %v632
    %v715 = vpop.permute.xlu0 %714
    %718 = vset.pattern.permute.xlu0 0
    %719 = vperm.xlu0 %718, %v633
    %v720 = vpop.permute.xlu0 %719
    %723 = vset.pattern.permute.xlu0 0
    %724 = vperm.xlu0 %723, %v634
    %v725 = vpop.permute.xlu0 %724
    %728 = vset.pattern.permute.xlu0 0
    %729 = vperm.xlu0 %728, %v635
    %v730 = vpop.permute.xlu0 %729
    %v732 = vmul.f32 %v636, %v655
    %v733 = vmul.f32 %v637, %v660
    %v734 = vmul.f32 %v638, %v665
    %v735 = vmul.f32 %v639, %v670
    %v736 = vmul.f32 %v640, %v675
    %v737 = vmul.f32 %v641, %v680
    %v738 = vmul.f32 %v642, %v685
    %v739 = vmul.f32 %v643, %v690
    %v740 = vmul.f32 %v644, %v695
    %v741 = vmul.f32 %v645, %v700
    %v742 = vmul.f32 %v646, %v705
    %v743 = vmul.f32 %v647, %v710
    %v744 = vmul.f32 %v648, %v715
    %v745 = vmul.f32 %v649, %v720
    %v746 = vmul.f32 %v650, %v725
    %v747 = vmul.f32 %v651, %v730
    %v748 = vadd.f32 %v588, %v732
    %v749 = vadd.f32 %v589, %v733
    %v750 = vadd.f32 %v590, %v734
    %v751 = vadd.f32 %v591, %v735
    %v752 = vadd.f32 %v592, %v736
    %v753 = vadd.f32 %v593, %v737
    %v754 = vadd.f32 %v594, %v738
    %v755 = vadd.f32 %v595, %v739
    %v756 = vadd.f32 %v596, %v740
    %v757 = vadd.f32 %v597, %v741
    %v758 = vadd.f32 %v598, %v742
    %v759 = vadd.f32 %v599, %v743
    %v760 = vadd.f32 %v600, %v744
    %v761 = vadd.f32 %v601, %v745
    %v762 = vadd.f32 %v602, %v746
    %v763 = vadd.f32 %v603, %v747
    %v764 = vadd.f32 %v604, %v620
    %v765 = vadd.f32 %v605, %v621
    %v766 = vadd.f32 %v606, %v622
    %v767 = vadd.f32 %v607, %v623
    %v768 = vadd.f32 %v608, %v624
    %v769 = vadd.f32 %v609, %v625
    %v770 = vadd.f32 %v610, %v626
    %v771 = vadd.f32 %v611, %v627
    %v772 = vadd.f32 %v612, %v628
    %v773 = vadd.f32 %v613, %v629
    %v774 = vadd.f32 %v614, %v630
    %v775 = vadd.f32 %v615, %v631
    %v776 = vadd.f32 %v616, %v632
    %v777 = vadd.f32 %v617, %v633
    %v778 = vadd.f32 %v618, %v634
    %v779 = vadd.f32 %v619, %v635
    %v780 = vld [vmem:[%s1 + $0x5] sm:$0x1]
    %v781 = vld [vmem:[%s1 + $0xd] sm:$0x1]
    %v782 = vld [vmem:[%s1 + $0x15] sm:$0x1]
    %v783 = vld [vmem:[%s1 + $0x1d] sm:$0x1]
    %v784 = vld [vmem:[%s1 + $0x25] sm:$0x1]
    %v785 = vld [vmem:[%s1 + $0x2d] sm:$0x1]
    %v786 = vld [vmem:[%s1 + $0x35] sm:$0x1]
    %v787 = vld [vmem:[%s1 + $0x3d] sm:$0x1]
    %v788 = vld [vmem:[%s1 + $0x45] sm:$0x1]
    %v789 = vld [vmem:[%s1 + $0x4d] sm:$0x1]
    %v790 = vld [vmem:[%s1 + $0x55] sm:$0x1]
    %v791 = vld [vmem:[%s1 + $0x5d] sm:$0x1]
    %v792 = vld [vmem:[%s1 + $0x65] sm:$0x1]
    %v793 = vld [vmem:[%s1 + $0x6d] sm:$0x1]
    %v794 = vld [vmem:[%s1 + $0x75] sm:$0x1]
    %v795 = vld [vmem:[%s1 + $0x7d] sm:$0x1]
    %v796 = vld [vmem:[%s0 + $0x5] sm:$0x1]
    %v797 = vld [vmem:[%s0 + $0xd] sm:$0x1]
    %v798 = vld [vmem:[%s0 + $0x15] sm:$0x1]
    %v799 = vld [vmem:[%s0 + $0x1d] sm:$0x1]
    %v800 = vld [vmem:[%s0 + $0x25] sm:$0x1]
    %v801 = vld [vmem:[%s0 + $0x2d] sm:$0x1]
    %v802 = vld [vmem:[%s0 + $0x35] sm:$0x1]
    %v803 = vld [vmem:[%s0 + $0x3d] sm:$0x1]
    %v804 = vld [vmem:[%s0 + $0x45] sm:$0x1]
    %v805 = vld [vmem:[%s0 + $0x4d] sm:$0x1]
    %v806 = vld [vmem:[%s0 + $0x55] sm:$0x1]
    %v807 = vld [vmem:[%s0 + $0x5d] sm:$0x1]
    %v808 = vld [vmem:[%s0 + $0x65] sm:$0x1]
    %v809 = vld [vmem:[%s0 + $0x6d] sm:$0x1]
    %v810 = vld [vmem:[%s0 + $0x75] sm:$0x1]
    %v811 = vld [vmem:[%s0 + $0x7d] sm:$0x1]
    %813 = vset.pattern.permute.xlu0 0
    %814 = vperm.xlu0 %813, %v780
    %v815 = vpop.permute.xlu0 %814
    %818 = vset.pattern.permute.xlu0 0
    %819 = vperm.xlu0 %818, %v781
    %v820 = vpop.permute.xlu0 %819
    %823 = vset.pattern.permute.xlu0 0
    %824 = vperm.xlu0 %823, %v782
    %v825 = vpop.permute.xlu0 %824
    %828 = vset.pattern.permute.xlu0 0
    %829 = vperm.xlu0 %828, %v783
    %v830 = vpop.permute.xlu0 %829
    %833 = vset.pattern.permute.xlu0 0
    %834 = vperm.xlu0 %833, %v784
    %v835 = vpop.permute.xlu0 %834
    %838 = vset.pattern.permute.xlu0 0
    %839 = vperm.xlu0 %838, %v785
    %v840 = vpop.permute.xlu0 %839
    %843 = vset.pattern.permute.xlu0 0
    %844 = vperm.xlu0 %843, %v786
    %v845 = vpop.permute.xlu0 %844
    %848 = vset.pattern.permute.xlu0 0
    %849 = vperm.xlu0 %848, %v787
    %v850 = vpop.permute.xlu0 %849
    %853 = vset.pattern.permute.xlu0 0
    %854 = vperm.xlu0 %853, %v788
    %v855 = vpop.permute.xlu0 %854
    %858 = vset.pattern.permute.xlu0 0
    %859 = vperm.xlu0 %858, %v789
    %v860 = vpop.permute.xlu0 %859
    %863 = vset.pattern.permute.xlu0 0
    %864 = vperm.xlu0 %863, %v790
    %v865 = vpop.permute.xlu0 %864
    %868 = vset.pattern.permute.xlu0 0
    %869 = vperm.xlu0 %868, %v791
    %v870 = vpop.permute.xlu0 %869
    %873 = vset.pattern.permute.xlu0 0
    %874 = vperm.xlu0 %873, %v792
    %v875 = vpop.permute.xlu0 %874
    %878 = vset.pattern.permute.xlu0 0
    %879 = vperm.xlu0 %878, %v793
    %v880 = vpop.permute.xlu0 %879
    %883 = vset.pattern.permute.xlu0 0
    %884 = vperm.xlu0 %883, %v794
    %v885 = vpop.permute.xlu0 %884
    %888 = vset.pattern.permute.xlu0 0
    %889 = vperm.xlu0 %888, %v795
    %v890 = vpop.permute.xlu0 %889
    %v892 = vmul.f32 %v796, %v815
    %v893 = vmul.f32 %v797, %v820
    %v894 = vmul.f32 %v798, %v825
    %v895 = vmul.f32 %v799, %v830
    %v896 = vmul.f32 %v800, %v835
    %v897 = vmul.f32 %v801, %v840
    %v898 = vmul.f32 %v802, %v845
    %v899 = vmul.f32 %v803, %v850
    %v900 = vmul.f32 %v804, %v855
    %v901 = vmul.f32 %v805, %v860
    %v902 = vmul.f32 %v806, %v865
    %v903 = vmul.f32 %v807, %v870
    %v904 = vmul.f32 %v808, %v875
    %v905 = vmul.f32 %v809, %v880
    %v906 = vmul.f32 %v810, %v885
    %v907 = vmul.f32 %v811, %v890
    %v908 = vadd.f32 %v748, %v892
    %v909 = vadd.f32 %v749, %v893
    %v910 = vadd.f32 %v750, %v894
    %v911 = vadd.f32 %v751, %v895
    %v912 = vadd.f32 %v752, %v896
    %v913 = vadd.f32 %v753, %v897
    %v914 = vadd.f32 %v754, %v898
    %v915 = vadd.f32 %v755, %v899
    %v916 = vadd.f32 %v756, %v900
    %v917 = vadd.f32 %v757, %v901
    %v918 = vadd.f32 %v758, %v902
    %v919 = vadd.f32 %v759, %v903
    %v920 = vadd.f32 %v760, %v904
    %v921 = vadd.f32 %v761, %v905
    %v922 = vadd.f32 %v762, %v906
    %v923 = vadd.f32 %v763, %v907
    %v924 = vadd.f32 %v764, %v780
    %v925 = vadd.f32 %v765, %v781
    %v926 = vadd.f32 %v766, %v782
    %v927 = vadd.f32 %v767, %v783
    %v928 = vadd.f32 %v768, %v784
    %v929 = vadd.f32 %v769, %v785
    %v930 = vadd.f32 %v770, %v786
    %v931 = vadd.f32 %v771, %v787
    %v932 = vadd.f32 %v772, %v788
    %v933 = vadd.f32 %v773, %v789
    %v934 = vadd.f32 %v774, %v790
    %v935 = vadd.f32 %v775, %v791
    %v936 = vadd.f32 %v776, %v792
    %v937 = vadd.f32 %v777, %v793
    %v938 = vadd.f32 %v778, %v794
    %v939 = vadd.f32 %v779, %v795
    %v940 = vld [vmem:[%s1 + $0x6] sm:$0x1]
    %v941 = vld [vmem:[%s1 + $0xe] sm:$0x1]
    %v942 = vld [vmem:[%s1 + $0x16] sm:$0x1]
    %v943 = vld [vmem:[%s1 + $0x1e] sm:$0x1]
    %v944 = vld [vmem:[%s1 + $0x26] sm:$0x1]
    %v945 = vld [vmem:[%s1 + $0x2e] sm:$0x1]
    %v946 = vld [vmem:[%s1 + $0x36] sm:$0x1]
    %v947 = vld [vmem:[%s1 + $0x3e] sm:$0x1]
    %v948 = vld [vmem:[%s1 + $0x46] sm:$0x1]
    %v949 = vld [vmem:[%s1 + $0x4e] sm:$0x1]
    %v950 = vld [vmem:[%s1 + $0x56] sm:$0x1]
    %v951 = vld [vmem:[%s1 + $0x5e] sm:$0x1]
    %v952 = vld [vmem:[%s1 + $0x66] sm:$0x1]
    %v953 = vld [vmem:[%s1 + $0x6e] sm:$0x1]
    %v954 = vld [vmem:[%s1 + $0x76] sm:$0x1]
    %v955 = vld [vmem:[%s1 + $0x7e] sm:$0x1]
    %v956 = vld [vmem:[%s0 + $0x6] sm:$0x1]
    %v957 = vld [vmem:[%s0 + $0xe] sm:$0x1]
    %v958 = vld [vmem:[%s0 + $0x16] sm:$0x1]
    %v959 = vld [vmem:[%s0 + $0x1e] sm:$0x1]
    %v960 = vld [vmem:[%s0 + $0x26] sm:$0x1]
    %v961 = vld [vmem:[%s0 + $0x2e] sm:$0x1]
    %v962 = vld [vmem:[%s0 + $0x36] sm:$0x1]
    %v963 = vld [vmem:[%s0 + $0x3e] sm:$0x1]
    %v964 = vld [vmem:[%s0 + $0x46] sm:$0x1]
    %v965 = vld [vmem:[%s0 + $0x4e] sm:$0x1]
    %v966 = vld [vmem:[%s0 + $0x56] sm:$0x1]
    %v967 = vld [vmem:[%s0 + $0x5e] sm:$0x1]
    %v968 = vld [vmem:[%s0 + $0x66] sm:$0x1]
    %v969 = vld [vmem:[%s0 + $0x6e] sm:$0x1]
    %v970 = vld [vmem:[%s0 + $0x76] sm:$0x1]
    %v971 = vld [vmem:[%s0 + $0x7e] sm:$0x1]
    %973 = vset.pattern.permute.xlu0 0
    %974 = vperm.xlu0 %973, %v940
    %v975 = vpop.permute.xlu0 %974
    %978 = vset.pattern.permute.xlu0 0
    %979 = vperm.xlu0 %978, %v941
    %v980 = vpop.permute.xlu0 %979
    %983 = vset.pattern.permute.xlu0 0
    %984 = vperm.xlu0 %983, %v942
    %v985 = vpop.permute.xlu0 %984
    %988 = vset.pattern.permute.xlu0 0
    %989 = vperm.xlu0 %988, %v943
    %v990 = vpop.permute.xlu0 %989
    %993 = vset.pattern.permute.xlu0 0
    %994 = vperm.xlu0 %993, %v944
    %v995 = vpop.permute.xlu0 %994
    %998 = vset.pattern.permute.xlu0 0
    %999 = vperm.xlu0 %998, %v945
    %v1000 = vpop.permute.xlu0 %999
    %1003 = vset.pattern.permute.xlu0 0
    %1004 = vperm.xlu0 %1003, %v946
    %v1005 = vpop.permute.xlu0 %1004
    %1008 = vset.pattern.permute.xlu0 0
    %1009 = vperm.xlu0 %1008, %v947
    %v1010 = vpop.permute.xlu0 %1009
    %1013 = vset.pattern.permute.xlu0 0
    %1014 = vperm.xlu0 %1013, %v948
    %v1015 = vpop.permute.xlu0 %1014
    %1018 = vset.pattern.permute.xlu0 0
    %1019 = vperm.xlu0 %1018, %v949
    %v1020 = vpop.permute.xlu0 %1019
    %1023 = vset.pattern.permute.xlu0 0
    %1024 = vperm.xlu0 %1023, %v950
    %v1025 = vpop.permute.xlu0 %1024
    %1028 = vset.pattern.permute.xlu0 0
    %1029 = vperm.xlu0 %1028, %v951
    %v1030 = vpop.permute.xlu0 %1029
    %1033 = vset.pattern.permute.xlu0 0
    %1034 = vperm.xlu0 %1033, %v952
    %v1035 = vpop.permute.xlu0 %1034
    %1038 = vset.pattern.permute.xlu0 0
    %1039 = vperm.xlu0 %1038, %v953
    %v1040 = vpop.permute.xlu0 %1039
    %1043 = vset.pattern.permute.xlu0 0
    %1044 = vperm.xlu0 %1043, %v954
    %v1045 = vpop.permute.xlu0 %1044
    %1048 = vset.pattern.permute.xlu0 0
    %1049 = vperm.xlu0 %1048, %v955
    %v1050 = vpop.permute.xlu0 %1049
    %v1052 = vmul.f32 %v956, %v975
    %v1053 = vmul.f32 %v957, %v980
    %v1054 = vmul.f32 %v958, %v985
    %v1055 = vmul.f32 %v959, %v990
    %v1056 = vmul.f32 %v960, %v995
    %v1057 = vmul.f32 %v961, %v1000
    %v1058 = vmul.f32 %v962, %v1005
    %v1059 = vmul.f32 %v963, %v1010
    %v1060 = vmul.f32 %v964, %v1015
    %v1061 = vmul.f32 %v965, %v1020
    %v1062 = vmul.f32 %v966, %v1025
    %v1063 = vmul.f32 %v967, %v1030
    %v1064 = vmul.f32 %v968, %v1035
    %v1065 = vmul.f32 %v969, %v1040
    %v1066 = vmul.f32 %v970, %v1045
    %v1067 = vmul.f32 %v971, %v1050
    %v1068 = vadd.f32 %v908, %v1052
    %v1069 = vadd.f32 %v909, %v1053
    %v1070 = vadd.f32 %v910, %v1054
    %v1071 = vadd.f32 %v911, %v1055
    %v1072 = vadd.f32 %v912, %v1056
    %v1073 = vadd.f32 %v913, %v1057
    %v1074 = vadd.f32 %v914, %v1058
    %v1075 = vadd.f32 %v915, %v1059
    %v1076 = vadd.f32 %v916, %v1060
    %v1077 = vadd.f32 %v917, %v1061
    %v1078 = vadd.f32 %v918, %v1062
    %v1079 = vadd.f32 %v919, %v1063
    %v1080 = vadd.f32 %v920, %v1064
    %v1081 = vadd.f32 %v921, %v1065
    %v1082 = vadd.f32 %v922, %v1066
    %v1083 = vadd.f32 %v923, %v1067
    %v1084 = vadd.f32 %v924, %v940
    %v1085 = vadd.f32 %v925, %v941
    %v1086 = vadd.f32 %v926, %v942
    %v1087 = vadd.f32 %v927, %v943
    %v1088 = vadd.f32 %v928, %v944
    %v1089 = vadd.f32 %v929, %v945
    %v1090 = vadd.f32 %v930, %v946
    %v1091 = vadd.f32 %v931, %v947
    %v1092 = vadd.f32 %v932, %v948
    %v1093 = vadd.f32 %v933, %v949
    %v1094 = vadd.f32 %v934, %v950
    %v1095 = vadd.f32 %v935, %v951
    %v1096 = vadd.f32 %v936, %v952
    %v1097 = vadd.f32 %v937, %v953
    %v1098 = vadd.f32 %v938, %v954
    %v1099 = vadd.f32 %v939, %v955
    %v1100 = vld [vmem:[%s1 + $0x7] sm:$0x1]
    %v1101 = vld [vmem:[%s1 + $0xf] sm:$0x1]
    %v1102 = vld [vmem:[%s1 + $0x17] sm:$0x1]
    %v1103 = vld [vmem:[%s1 + $0x1f] sm:$0x1]
    %v1104 = vld [vmem:[%s1 + $0x27] sm:$0x1]
    %v1105 = vld [vmem:[%s1 + $0x2f] sm:$0x1]
    %v1106 = vld [vmem:[%s1 + $0x37] sm:$0x1]
    %v1107 = vld [vmem:[%s1 + $0x3f] sm:$0x1]
    %v1108 = vld [vmem:[%s1 + $0x47] sm:$0x1]
    %v1109 = vld [vmem:[%s1 + $0x4f] sm:$0x1]
    %v1110 = vld [vmem:[%s1 + $0x57] sm:$0x1]
    %v1111 = vld [vmem:[%s1 + $0x5f] sm:$0x1]
    %v1112 = vld [vmem:[%s1 + $0x67] sm:$0x1]
    %v1113 = vld [vmem:[%s1 + $0x6f] sm:$0x1]
    %v1114 = vld [vmem:[%s1 + $0x77] sm:$0x1]
    %v1115 = vld [vmem:[%s1 + $0x7f] sm:$0x1]
    %v1116 = vld [vmem:[%s0 + $0x7] sm:$0x1]
    %v1117 = vld [vmem:[%s0 + $0xf] sm:$0x1]
    %v1118 = vld [vmem:[%s0 + $0x17] sm:$0x1]
    %v1119 = vld [vmem:[%s0 + $0x1f] sm:$0x1]
    %v1120 = vld [vmem:[%s0 + $0x27] sm:$0x1]
    %v1121 = vld [vmem:[%s0 + $0x2f] sm:$0x1]
    %v1122 = vld [vmem:[%s0 + $0x37] sm:$0x1]
    %v1123 = vld [vmem:[%s0 + $0x3f] sm:$0x1]
    %v1124 = vld [vmem:[%s0 + $0x47] sm:$0x1]
    %v1125 = vld [vmem:[%s0 + $0x4f] sm:$0x1]
    %v1126 = vld [vmem:[%s0 + $0x57] sm:$0x1]
    %v1127 = vld [vmem:[%s0 + $0x5f] sm:$0x1]
    %v1128 = vld [vmem:[%s0 + $0x67] sm:$0x1]
    %v1129 = vld [vmem:[%s0 + $0x6f] sm:$0x1]
    %v1130 = vld [vmem:[%s0 + $0x77] sm:$0x1]
    %v1131 = vld [vmem:[%s0 + $0x7f] sm:$0x1]
    %1133 = vset.pattern.permute.xlu0 0
    %1134 = vperm.xlu0 %1133, %v1100
    %v1135 = vpop.permute.xlu0 %1134
    %1138 = vset.pattern.permute.xlu0 0
    %1139 = vperm.xlu0 %1138, %v1101
    %v1140 = vpop.permute.xlu0 %1139
    %1143 = vset.pattern.permute.xlu0 0
    %1144 = vperm.xlu0 %1143, %v1102
    %v1145 = vpop.permute.xlu0 %1144
    %1148 = vset.pattern.permute.xlu0 0
    %1149 = vperm.xlu0 %1148, %v1103
    %v1150 = vpop.permute.xlu0 %1149
    %1153 = vset.pattern.permute.xlu0 0
    %1154 = vperm.xlu0 %1153, %v1104
    %v1155 = vpop.permute.xlu0 %1154
    %1158 = vset.pattern.permute.xlu0 0
    %1159 = vperm.xlu0 %1158, %v1105
    %v1160 = vpop.permute.xlu0 %1159
    %1163 = vset.pattern.permute.xlu0 0
    %1164 = vperm.xlu0 %1163, %v1106
    %v1165 = vpop.permute.xlu0 %1164
    %1168 = vset.pattern.permute.xlu0 0
    %1169 = vperm.xlu0 %1168, %v1107
    %v1170 = vpop.permute.xlu0 %1169
    %1173 = vset.pattern.permute.xlu0 0
    %1174 = vperm.xlu0 %1173, %v1108
    %v1175 = vpop.permute.xlu0 %1174
    %1178 = vset.pattern.permute.xlu0 0
    %1179 = vperm.xlu0 %1178, %v1109
    %v1180 = vpop.permute.xlu0 %1179
    %1183 = vset.pattern.permute.xlu0 0
    %1184 = vperm.xlu0 %1183, %v1110
    %v1185 = vpop.permute.xlu0 %1184
    %1188 = vset.pattern.permute.xlu0 0
    %1189 = vperm.xlu0 %1188, %v1111
    %v1190 = vpop.permute.xlu0 %1189
    %1193 = vset.pattern.permute.xlu0 0
    %1194 = vperm.xlu0 %1193, %v1112
    %v1195 = vpop.permute.xlu0 %1194
    %1198 = vset.pattern.permute.xlu0 0
    %1199 = vperm.xlu0 %1198, %v1113
    %v1200 = vpop.permute.xlu0 %1199
    %1203 = vset.pattern.permute.xlu0 0
    %1204 = vperm.xlu0 %1203, %v1114
    %v1205 = vpop.permute.xlu0 %1204
    %1208 = vset.pattern.permute.xlu0 0
    %1209 = vperm.xlu0 %1208, %v1115
    %v1210 = vpop.permute.xlu0 %1209
    %v1212 = vmul.f32 %v1116, %v1135
    %v1213 = vmul.f32 %v1117, %v1140
    %v1214 = vmul.f32 %v1118, %v1145
    %v1215 = vmul.f32 %v1119, %v1150
    %v1216 = vmul.f32 %v1120, %v1155
    %v1217 = vmul.f32 %v1121, %v1160
    %v1218 = vmul.f32 %v1122, %v1165
    %v1219 = vmul.f32 %v1123, %v1170
    %v1220 = vmul.f32 %v1124, %v1175
    %v1221 = vmul.f32 %v1125, %v1180
    %v1222 = vmul.f32 %v1126, %v1185
    %v1223 = vmul.f32 %v1127, %v1190
    %v1224 = vmul.f32 %v1128, %v1195
    %v1225 = vmul.f32 %v1129, %v1200
    %v1226 = vmul.f32 %v1130, %v1205
    %v1227 = vmul.f32 %v1131, %v1210
    %v1228 = vadd.f32 %v1068, %v1212
    %v1229 = vadd.f32 %v1069, %v1213
    %v1230 = vadd.f32 %v1070, %v1214
    %v1231 = vadd.f32 %v1071, %v1215
    %v1232 = vadd.f32 %v1072, %v1216
    %v1233 = vadd.f32 %v1073, %v1217
    %v1234 = vadd.f32 %v1074, %v1218
    %v1235 = vadd.f32 %v1075, %v1219
    %v1236 = vadd.f32 %v1076, %v1220
    %v1237 = vadd.f32 %v1077, %v1221
    %v1238 = vadd.f32 %v1078, %v1222
    %v1239 = vadd.f32 %v1079, %v1223
    %v1240 = vadd.f32 %v1080, %v1224
    %v1241 = vadd.f32 %v1081, %v1225
    %v1242 = vadd.f32 %v1082, %v1226
    %v1243 = vadd.f32 %v1083, %v1227
    %v1244 = vadd.f32 %v1084, %v1100
    %v1245 = vadd.f32 %v1085, %v1101
    %v1246 = vadd.f32 %v1086, %v1102
    %v1247 = vadd.f32 %v1087, %v1103
    %v1248 = vadd.f32 %v1088, %v1104
    %v1249 = vadd.f32 %v1089, %v1105
    %v1250 = vadd.f32 %v1090, %v1106
    %v1251 = vadd.f32 %v1091, %v1107
    %v1252 = vadd.f32 %v1092, %v1108
    %v1253 = vadd.f32 %v1093, %v1109
    %v1254 = vadd.f32 %v1094, %v1110
    %v1255 = vadd.f32 %v1095, %v1111
    %v1256 = vadd.f32 %v1096, %v1112
    %v1257 = vadd.f32 %v1097, %v1113
    %v1258 = vadd.f32 %v1098, %v1114
    %v1259 = vadd.f32 %v1099, %v1115
    %v1260 = vmax.f32 %v1244, 1.0
    %v1261 = vmax.f32 %v1245, 1.0
    %v1262 = vmax.f32 %v1246, 1.0
    %v1263 = vmax.f32 %v1247, 1.0
    %v1264 = vmax.f32 %v1248, 1.0
    %v1265 = vmax.f32 %v1249, 1.0
    %v1266 = vmax.f32 %v1250, 1.0
    %v1267 = vmax.f32 %v1251, 1.0
    %v1268 = vmax.f32 %v1252, 1.0
    %v1269 = vmax.f32 %v1253, 1.0
    %v1270 = vmax.f32 %v1254, 1.0
    %v1271 = vmax.f32 %v1255, 1.0
    %v1272 = vmax.f32 %v1256, 1.0
    %v1273 = vmax.f32 %v1257, 1.0
    %v1274 = vmax.f32 %v1258, 1.0
    %v1275 = vmax.f32 %v1259, 1.0
    %v1276 = vrcp.pop %v1260
    %v1277 = vmul.f32 %v1260, %v1276
    %v1278 = vsub.f32 1.0, %v1277
    %v1279 = vmul.f32 %v1276, %v1278
    %v1280 = vadd.f32 %v1276, %v1279
    %vm1281 = vweird.f32 %v1260
    %vm1282 = vweird.f32 %v1276
    %vm1283 = vmor %vm1281, %vm1282
    %v1284 = vsel %vm1283, %v1276, %v1280
    %v1285 = vand.u32 2147483647, %v1260
    %vm1286 = vcmp.eq.f32.partialorder %v1285, 8.507059e+37
    %v1287 = vand.u32 %v1260, 2147483648
    %v1288 = vor.u32 1.1754944e-38, %v1287
    %v1289 = vsel %vm1286, %v1288, %v1284
    %v1290 = vmul.f32 1.0, %v1289
    %v1291 = vrcp.pop %v1261
    %v1292 = vmul.f32 %v1261, %v1291
    %v1293 = vsub.f32 1.0, %v1292
    %v1294 = vmul.f32 %v1291, %v1293
    %v1295 = vadd.f32 %v1291, %v1294
    %vm1296 = vweird.f32 %v1261
    %vm1297 = vweird.f32 %v1291
    %vm1298 = vmor %vm1296, %vm1297
    %v1299 = vsel %vm1298, %v1291, %v1295
    %v1300 = vand.u32 2147483647, %v1261
    %vm1301 = vcmp.eq.f32.partialorder %v1300, 8.507059e+37
    %v1302 = vand.u32 %v1261, 2147483648
    %v1303 = vor.u32 1.1754944e-38, %v1302
    %v1304 = vsel %vm1301, %v1303, %v1299
    %v1305 = vmul.f32 1.0, %v1304
    %v1306 = vrcp.pop %v1262
    %v1307 = vmul.f32 %v1262, %v1306
    %v1308 = vsub.f32 1.0, %v1307
    %v1309 = vmul.f32 %v1306, %v1308
    %v1310 = vadd.f32 %v1306, %v1309
    %vm1311 = vweird.f32 %v1262
    %vm1312 = vweird.f32 %v1306
    %vm1313 = vmor %vm1311, %vm1312
    %v1314 = vsel %vm1313, %v1306, %v1310
    %v1315 = vand.u32 2147483647, %v1262
    %vm1316 = vcmp.eq.f32.partialorder %v1315, 8.507059e+37
    %v1317 = vand.u32 %v1262, 2147483648
    %v1318 = vor.u32 1.1754944e-38, %v1317
    %v1319 = vsel %vm1316, %v1318, %v1314
    %v1320 = vmul.f32 1.0, %v1319
    %v1321 = vrcp.pop %v1263
    %v1322 = vmul.f32 %v1263, %v1321
    %v1323 = vsub.f32 1.0, %v1322
    %v1324 = vmul.f32 %v1321, %v1323
    %v1325 = vadd.f32 %v1321, %v1324
    %vm1326 = vweird.f32 %v1263
    %vm1327 = vweird.f32 %v1321
    %vm1328 = vmor %vm1326, %vm1327
    %v1329 = vsel %vm1328, %v1321, %v1325
    %v1330 = vand.u32 2147483647, %v1263
    %vm1331 = vcmp.eq.f32.partialorder %v1330, 8.507059e+37
    %v1332 = vand.u32 %v1263, 2147483648
    %v1333 = vor.u32 1.1754944e-38, %v1332
    %v1334 = vsel %vm1331, %v1333, %v1329
    %v1335 = vmul.f32 1.0, %v1334
    %v1336 = vrcp.pop %v1264
    %v1337 = vmul.f32 %v1264, %v1336
    %v1338 = vsub.f32 1.0, %v1337
    %v1339 = vmul.f32 %v1336, %v1338
    %v1340 = vadd.f32 %v1336, %v1339
    %vm1341 = vweird.f32 %v1264
    %vm1342 = vweird.f32 %v1336
    %vm1343 = vmor %vm1341, %vm1342
    %v1344 = vsel %vm1343, %v1336, %v1340
    %v1345 = vand.u32 2147483647, %v1264
    %vm1346 = vcmp.eq.f32.partialorder %v1345, 8.507059e+37
    %v1347 = vand.u32 %v1264, 2147483648
    %v1348 = vor.u32 1.1754944e-38, %v1347
    %v1349 = vsel %vm1346, %v1348, %v1344
    %v1350 = vmul.f32 1.0, %v1349
    %v1351 = vrcp.pop %v1265
    %v1352 = vmul.f32 %v1265, %v1351
    %v1353 = vsub.f32 1.0, %v1352
    %v1354 = vmul.f32 %v1351, %v1353
    %v1355 = vadd.f32 %v1351, %v1354
    %vm1356 = vweird.f32 %v1265
    %vm1357 = vweird.f32 %v1351
    %vm1358 = vmor %vm1356, %vm1357
    %v1359 = vsel %vm1358, %v1351, %v1355
    %v1360 = vand.u32 2147483647, %v1265
    %vm1361 = vcmp.eq.f32.partialorder %v1360, 8.507059e+37
    %v1362 = vand.u32 %v1265, 2147483648
    %v1363 = vor.u32 1.1754944e-38, %v1362
    %v1364 = vsel %vm1361, %v1363, %v1359
    %v1365 = vmul.f32 1.0, %v1364
    %v1366 = vrcp.pop %v1266
    %v1367 = vmul.f32 %v1266, %v1366
    %v1368 = vsub.f32 1.0, %v1367
    %v1369 = vmul.f32 %v1366, %v1368
    %v1370 = vadd.f32 %v1366, %v1369
    %vm1371 = vweird.f32 %v1266
    %vm1372 = vweird.f32 %v1366
    %vm1373 = vmor %vm1371, %vm1372
    %v1374 = vsel %vm1373, %v1366, %v1370
    %v1375 = vand.u32 2147483647, %v1266
    %vm1376 = vcmp.eq.f32.partialorder %v1375, 8.507059e+37
    %v1377 = vand.u32 %v1266, 2147483648
    %v1378 = vor.u32 1.1754944e-38, %v1377
    %v1379 = vsel %vm1376, %v1378, %v1374
    %v1380 = vmul.f32 1.0, %v1379
    %v1381 = vrcp.pop %v1267
    %v1382 = vmul.f32 %v1267, %v1381
    %v1383 = vsub.f32 1.0, %v1382
    %v1384 = vmul.f32 %v1381, %v1383
    %v1385 = vadd.f32 %v1381, %v1384
    %vm1386 = vweird.f32 %v1267
    %vm1387 = vweird.f32 %v1381
    %vm1388 = vmor %vm1386, %vm1387
    %v1389 = vsel %vm1388, %v1381, %v1385
    %v1390 = vand.u32 2147483647, %v1267
    %vm1391 = vcmp.eq.f32.partialorder %v1390, 8.507059e+37
    %v1392 = vand.u32 %v1267, 2147483648
    %v1393 = vor.u32 1.1754944e-38, %v1392
    %v1394 = vsel %vm1391, %v1393, %v1389
    %v1395 = vmul.f32 1.0, %v1394
    %v1396 = vrcp.pop %v1268
    %v1397 = vmul.f32 %v1268, %v1396
    %v1398 = vsub.f32 1.0, %v1397
    %v1399 = vmul.f32 %v1396, %v1398
    %v1400 = vadd.f32 %v1396, %v1399
    %vm1401 = vweird.f32 %v1268
    %vm1402 = vweird.f32 %v1396
    %vm1403 = vmor %vm1401, %vm1402
    %v1404 = vsel %vm1403, %v1396, %v1400
    %v1405 = vand.u32 2147483647, %v1268
    %vm1406 = vcmp.eq.f32.partialorder %v1405, 8.507059e+37
    %v1407 = vand.u32 %v1268, 2147483648
    %v1408 = vor.u32 1.1754944e-38, %v1407
    %v1409 = vsel %vm1406, %v1408, %v1404
    %v1410 = vmul.f32 1.0, %v1409
    %v1411 = vrcp.pop %v1269
    %v1412 = vmul.f32 %v1269, %v1411
    %v1413 = vsub.f32 1.0, %v1412
    %v1414 = vmul.f32 %v1411, %v1413
    %v1415 = vadd.f32 %v1411, %v1414
    %vm1416 = vweird.f32 %v1269
    %vm1417 = vweird.f32 %v1411
    %vm1418 = vmor %vm1416, %vm1417
    %v1419 = vsel %vm1418, %v1411, %v1415
    %v1420 = vand.u32 2147483647, %v1269
    %vm1421 = vcmp.eq.f32.partialorder %v1420, 8.507059e+37
    %v1422 = vand.u32 %v1269, 2147483648
    %v1423 = vor.u32 1.1754944e-38, %v1422
    %v1424 = vsel %vm1421, %v1423, %v1419
    %v1425 = vmul.f32 1.0, %v1424
    %v1426 = vrcp.pop %v1270
    %v1427 = vmul.f32 %v1270, %v1426
    %v1428 = vsub.f32 1.0, %v1427
    %v1429 = vmul.f32 %v1426, %v1428
    %v1430 = vadd.f32 %v1426, %v1429
    %vm1431 = vweird.f32 %v1270
    %vm1432 = vweird.f32 %v1426
    %vm1433 = vmor %vm1431, %vm1432
    %v1434 = vsel %vm1433, %v1426, %v1430
    %v1435 = vand.u32 2147483647, %v1270
    %vm1436 = vcmp.eq.f32.partialorder %v1435, 8.507059e+37
    %v1437 = vand.u32 %v1270, 2147483648
    %v1438 = vor.u32 1.1754944e-38, %v1437
    %v1439 = vsel %vm1436, %v1438, %v1434
    %v1440 = vmul.f32 1.0, %v1439
    %v1441 = vrcp.pop %v1271
    %v1442 = vmul.f32 %v1271, %v1441
    %v1443 = vsub.f32 1.0, %v1442
    %v1444 = vmul.f32 %v1441, %v1443
    %v1445 = vadd.f32 %v1441, %v1444
    %vm1446 = vweird.f32 %v1271
    %vm1447 = vweird.f32 %v1441
    %vm1448 = vmor %vm1446, %vm1447
    %v1449 = vsel %vm1448, %v1441, %v1445
    %v1450 = vand.u32 2147483647, %v1271
    %vm1451 = vcmp.eq.f32.partialorder %v1450, 8.507059e+37
    %v1452 = vand.u32 %v1271, 2147483648
    %v1453 = vor.u32 1.1754944e-38, %v1452
    %v1454 = vsel %vm1451, %v1453, %v1449
    %v1455 = vmul.f32 1.0, %v1454
    %v1456 = vrcp.pop %v1272
    %v1457 = vmul.f32 %v1272, %v1456
    %v1458 = vsub.f32 1.0, %v1457
    %v1459 = vmul.f32 %v1456, %v1458
    %v1460 = vadd.f32 %v1456, %v1459
    %vm1461 = vweird.f32 %v1272
    %vm1462 = vweird.f32 %v1456
    %vm1463 = vmor %vm1461, %vm1462
    %v1464 = vsel %vm1463, %v1456, %v1460
    %v1465 = vand.u32 2147483647, %v1272
    %vm1466 = vcmp.eq.f32.partialorder %v1465, 8.507059e+37
    %v1467 = vand.u32 %v1272, 2147483648
    %v1468 = vor.u32 1.1754944e-38, %v1467
    %v1469 = vsel %vm1466, %v1468, %v1464
    %v1470 = vmul.f32 1.0, %v1469
    %v1471 = vrcp.pop %v1273
    %v1472 = vmul.f32 %v1273, %v1471
    %v1473 = vsub.f32 1.0, %v1472
    %v1474 = vmul.f32 %v1471, %v1473
    %v1475 = vadd.f32 %v1471, %v1474
    %vm1476 = vweird.f32 %v1273
    %vm1477 = vweird.f32 %v1471
    %vm1478 = vmor %vm1476, %vm1477
    %v1479 = vsel %vm1478, %v1471, %v1475
    %v1480 = vand.u32 2147483647, %v1273
    %vm1481 = vcmp.eq.f32.partialorder %v1480, 8.507059e+37
    %v1482 = vand.u32 %v1273, 2147483648
    %v1483 = vor.u32 1.1754944e-38, %v1482
    %v1484 = vsel %vm1481, %v1483, %v1479
    %v1485 = vmul.f32 1.0, %v1484
    %v1486 = vrcp.pop %v1274
    %v1487 = vmul.f32 %v1274, %v1486
    %v1488 = vsub.f32 1.0, %v1487
    %v1489 = vmul.f32 %v1486, %v1488
    %v1490 = vadd.f32 %v1486, %v1489
    %vm1491 = vweird.f32 %v1274
    %vm1492 = vweird.f32 %v1486
    %vm1493 = vmor %vm1491, %vm1492
    %v1494 = vsel %vm1493, %v1486, %v1490
    %v1495 = vand.u32 2147483647, %v1274
    %vm1496 = vcmp.eq.f32.partialorder %v1495, 8.507059e+37
    %v1497 = vand.u32 %v1274, 2147483648
    %v1498 = vor.u32 1.1754944e-38, %v1497
    %v1499 = vsel %vm1496, %v1498, %v1494
    %v1500 = vmul.f32 1.0, %v1499
    %v1501 = vrcp.pop %v1275
    %v1502 = vmul.f32 %v1275, %v1501
    %v1503 = vsub.f32 1.0, %v1502
    %v1504 = vmul.f32 %v1501, %v1503
    %v1505 = vadd.f32 %v1501, %v1504
    %vm1506 = vweird.f32 %v1275
    %vm1507 = vweird.f32 %v1501
    %vm1508 = vmor %vm1506, %vm1507
    %v1509 = vsel %vm1508, %v1501, %v1505
    %v1510 = vand.u32 2147483647, %v1275
    %vm1511 = vcmp.eq.f32.partialorder %v1510, 8.507059e+37
    %v1512 = vand.u32 %v1275, 2147483648
    %v1513 = vor.u32 1.1754944e-38, %v1512
    %v1514 = vsel %vm1511, %v1513, %v1509
    %v1515 = vmul.f32 1.0, %v1514
    %1517 = vset.pattern.permute.xlu0 0
    %1518 = vperm.xlu0 %1517, %v1290
    %v1519 = vpop.permute.xlu0 %1518
    %1522 = vset.pattern.permute.xlu0 0
    %1523 = vperm.xlu0 %1522, %v1305
    %v1524 = vpop.permute.xlu0 %1523
    %1527 = vset.pattern.permute.xlu0 0
    %1528 = vperm.xlu0 %1527, %v1320
    %v1529 = vpop.permute.xlu0 %1528
    %1532 = vset.pattern.permute.xlu0 0
    %1533 = vperm.xlu0 %1532, %v1335
    %v1534 = vpop.permute.xlu0 %1533
    %1537 = vset.pattern.permute.xlu0 0
    %1538 = vperm.xlu0 %1537, %v1350
    %v1539 = vpop.permute.xlu0 %1538
    %1542 = vset.pattern.permute.xlu0 0
    %1543 = vperm.xlu0 %1542, %v1365
    %v1544 = vpop.permute.xlu0 %1543
    %1547 = vset.pattern.permute.xlu0 0
    %1548 = vperm.xlu0 %1547, %v1380
    %v1549 = vpop.permute.xlu0 %1548
    %1552 = vset.pattern.permute.xlu0 0
    %1553 = vperm.xlu0 %1552, %v1395
    %v1554 = vpop.permute.xlu0 %1553
    %1557 = vset.pattern.permute.xlu0 0
    %1558 = vperm.xlu0 %1557, %v1410
    %v1559 = vpop.permute.xlu0 %1558
    %1562 = vset.pattern.permute.xlu0 0
    %1563 = vperm.xlu0 %1562, %v1425
    %v1564 = vpop.permute.xlu0 %1563
    %1567 = vset.pattern.permute.xlu0 0
    %1568 = vperm.xlu0 %1567, %v1440
    %v1569 = vpop.permute.xlu0 %1568
    %1572 = vset.pattern.permute.xlu0 0
    %1573 = vperm.xlu0 %1572, %v1455
    %v1574 = vpop.permute.xlu0 %1573
    %1577 = vset.pattern.permute.xlu0 0
    %1578 = vperm.xlu0 %1577, %v1470
    %v1579 = vpop.permute.xlu0 %1578
    %1582 = vset.pattern.permute.xlu0 0
    %1583 = vperm.xlu0 %1582, %v1485
    %v1584 = vpop.permute.xlu0 %1583
    %1587 = vset.pattern.permute.xlu0 0
    %1588 = vperm.xlu0 %1587, %v1500
    %v1589 = vpop.permute.xlu0 %1588
    %1592 = vset.pattern.permute.xlu0 0
    %1593 = vperm.xlu0 %1592, %v1515
    %v1594 = vpop.permute.xlu0 %1593
    %v1596 = vmul.f32 %v1228, %v1519
    %v1597 = vmul.f32 %v1229, %v1524
    %v1598 = vmul.f32 %v1230, %v1529
    %v1599 = vmul.f32 %v1231, %v1534
    %v1600 = vmul.f32 %v1232, %v1539
    %v1601 = vmul.f32 %v1233, %v1544
    %v1602 = vmul.f32 %v1234, %v1549
    %v1603 = vmul.f32 %v1235, %v1554
    %v1604 = vmul.f32 %v1236, %v1559
    %v1605 = vmul.f32 %v1237, %v1564
    %v1606 = vmul.f32 %v1238, %v1569
    %v1607 = vmul.f32 %v1239, %v1574
    %v1608 = vmul.f32 %v1240, %v1579
    %v1609 = vmul.f32 %v1241, %v1584
    %v1610 = vmul.f32 %v1242, %v1589
    %v1611 = vmul.f32 %v1243, %v1594
    %v1628 = vrot.slane %v1597, 7
    %vm1629 = vcmask 1041409
    %v1630 = vsel %vm1629, %v1628, %v1596
    %v1631 = vrot.slane %v1598, 6
    %vm1632 = vcmask 1042434
    %v1633 = vsel %vm1632, %v1631, %v1630
    %v1634 = vrot.slane %v1599, 5
    %vm1635 = vcmask 1043459
    %v1636 = vsel %vm1635, %v1634, %v1633
    %v1637 = vrot.slane %v1600, 4
    %vm1638 = vcmask 1044484
    %v1639 = vsel %vm1638, %v1637, %v1636
    %v1640 = vrot.slane %v1601, 3
    %vm1641 = vcmask 1045509
    %v1642 = vsel %vm1641, %v1640, %v1639
    %v1643 = vrot.slane %v1602, 2
    %vm1644 = vcmask 1046534
    %v1645 = vsel %vm1644, %v1643, %v1642
    %v1646 = vrot.slane %v1603, 1
    %vm1647 = vcmask 1047559
    %v1648 = vsel %vm1647, %v1646, %v1645
    %v1649 = vrot.slane %v1605, 7
    %v1650 = vsel %vm1629, %v1649, %v1604
    %v1651 = vrot.slane %v1606, 6
    %v1652 = vsel %vm1632, %v1651, %v1650
    %v1653 = vrot.slane %v1607, 5
    %v1654 = vsel %vm1635, %v1653, %v1652
    %v1655 = vrot.slane %v1608, 4
    %v1656 = vsel %vm1638, %v1655, %v1654
    %v1657 = vrot.slane %v1609, 3
    %v1658 = vsel %vm1641, %v1657, %v1656
    %v1659 = vrot.slane %v1610, 2
    %v1660 = vsel %vm1644, %v1659, %v1658
    %v1661 = vrot.slane %v1611, 1
    %v1662 = vsel %vm1647, %v1661, %v1660
    %1665 = vst [vmem:[#allocation2] sm:$0xff] %v1648
    %1666 = vst [vmem:[#allocation2 + $0x8] sm:$0xff] %v1662
    // Predicated region
    $region10: #{tpu_custom_call.1} parent=1 // pred_check
      _
    $region11: #{tpu_custom_call.1} parent=1 // pred_check_branch
      %1668 = sbr.rel (0) target = $region13
    $region12: #{tpu_custom_call.1} parent=1 // pred_region
      %1670 = vsyncadd [#allocation3], 0
      %s1671 = sshll.u32 [#allocation2], 4
      %s1672 = int_to_ptr.vmem [resolvable:$true] %s1671
      %s1673 = sshll.u32 %s2, 4
      %s1674 = int_to_ptr.hbm [resolvable:$true] %s1673
      %1679 = dma.vmem_to_hbm [thread:$0]  %s1672, 256, %s1674, [#allocation3], 128, 128, 8
    $region13: #{tpu_custom_call.1} parent=1 // pred_fallthru
      _
    // Predicated region
    $region14: #{tpu_custom_call.1} parent=1 // pred_check
      _
    $region15: #{tpu_custom_call.1} parent=1 // pred_check_branch
      %1681 = sbr.rel (0) target = $region17
    $region16: #{tpu_custom_call.1} parent=1 // pred_region
      %1683 = dma.done [#allocation3], 256
    $region17: #{tpu_custom_call.1} parent=1 // pred_fallthru
      _
    %1684 = vsyncpa [#allocation3], 1

</llo_original>
